<compile_context>
chip_gen: v7x
topology: tpu7x:2x2x1
jax: 0.10.0
libtpu: 0.0.40
codegen_flags: <defaults>
</compile_context>

<pallas_src>
import functools

import jax
import jax.numpy as jnp
from jax.experimental import pallas as pl
from jax.experimental.pallas import tpu as pltpu

BN_EPS = 1e-5
F_DIM = 32
_HI = jax.lax.Precision.HIGHEST


def _linear_t(x, w):
    """x @ w.T with w stored PyTorch-style [out, in]; contraction is on the
    'in' dim of both operands so the MXU consumes w without a transpose."""
    return jax.lax.dot_general(
        x, w,
        dimension_numbers=(((1,), (1,)), ((), ())),
        precision=_HI,
        preferred_element_type=jnp.float32,
    )


def member_gcn_kernel(idx_ref, const_ref, a_ref, o_ref, *, v_pad):
    idx = idx_ref[...]        # (N, 3) int32 -- offset indices into packed table
    a = a_ref[...]            # (N, N) f32   -- adjacency (before self-loops)
    n = a.shape[0]
    f = o_ref.shape[1]

    # ---- static, 8-row-aligned views into the packed constant slab --------
    table = const_ref[0:v_pad, :]                        # (V_pad, 32) embeddings
    gb = const_ref[v_pad:v_pad + 8, :]                   # row 0 = gamma, row 1 = beta
    gamma = gb[0:1, :]
    beta = gb[1:2, :]
    w1 = const_ref[v_pad + 8:v_pad + 8 + f, :]           # (32, 32) [out, in]
    w2 = const_ref[v_pad + 8 + f:v_pad + 8 + 2 * f, :]   # (32, 32) [out, in]

    # ---- fused embedding gather + concat: 3-hot (N,V_pad) @ (V_pad,32) ----
    # The three sub-tables occupy disjoint rows AND disjoint columns, so one
    # 3-hot row selects and places all three embeddings.  Precision.HIGHEST
    # keeps the f32 table values intact (no single-pass bf16 truncation).
    lane = jax.lax.broadcasted_iota(jnp.int32, (n, v_pad), 1)
    hit = ((lane == idx[:, 0:1]) | (lane == idx[:, 1:2]) | (lane == idx[:, 2:3]))
    onehot = jnp.where(hit, 1.0, 0.0)
    x = jnp.dot(onehot, table, precision=_HI,
                preferred_element_type=jnp.float32)          # (N, 32)

    # ---- BatchNorm1d(32), training mode: batch mean / biased batch var ----
    # TODO(synk): running-mean/var buffer updates (training side effect) are
    # not emitted; only the forward output is produced.
    mean = jnp.mean(x, axis=0, keepdims=True)
    centered = x - mean
    var = jnp.mean(centered * centered, axis=0, keepdims=True)
    x_bn = centered * jax.lax.rsqrt(var + BN_EPS) * gamma + beta

    # ---- normalize(A): D = diag(rowsum(A+I)^-0.5); A_n = D (A+I) D --------
    # Applied implicitly:  A_n @ Y = s * (A @ (s*Y) + (s*Y)),  s = d^-1/2.
    d = jnp.sum(a, axis=1, keepdims=True) + 1.0   # rowsum(A) + 1 == rowsum(A+I)
    s = jax.lax.rsqrt(d)                          # (N, 1)

    # ---- GCN: fc2(A_n relu(fc1(A_n X))), bias-free Linear layers ----------
    y1 = s * x_bn
    ax = s * (jnp.dot(a, y1, precision=_HI,
                      preferred_element_type=jnp.float32) + y1)
    h = jnp.maximum(_linear_t(ax, w1), 0.0)
    y2 = s * h
    ah = s * (jnp.dot(a, y2, precision=_HI,
                      preferred_element_type=jnp.float32) + y2)
    o_ref[...] = _linear_t(ah, w2)
    # (At large N: reshape the output lane-dense in the wrapper; at N=8 the
    #  masked 32-lane store is irrelevant.)


def pack_params(params):
    """Hoisted out of the per-forward path: build the packed constant slab
    once per parameter set.  Layout (all segments 8-row aligned):
       rows [0, V_pad)            column-placed [member|party|state] table
       rows [V_pad, V_pad+8)      row 0 = bn gamma, row 1 = bn beta
       rows [V_pad+8, V_pad+40)   gcn_w1  [out, in]
       rows [V_pad+40, V_pad+72)  gcn_w2  [out, in]
    """
    mt = params["member_embedding"].astype(jnp.float32)   # (Vm, 16)
    pt = params["party_embedding"].astype(jnp.float32)    # (Vp, 8)
    st = params["state_embedding"].astype(jnp.float32)    # (Vs, 8)
    vm, vp, vs = mt.shape[0], pt.shape[0], st.shape[0]
    v = vm + vp + vs
    v_pad = -(-v // 8) * 8                                 # sublane-align
    f = F_DIM

    # Column-placed, row-stacked embedding table; matches
    # torch.cat([member(16), party(8), state(8)], dim=1) after the 3-hot dot.
    table = jnp.concatenate(
        [
            jnp.pad(mt, ((0, 0), (0, f - 16))),            # cols  0:16
            jnp.pad(pt, ((0, 0), (16, f - 24))),           # cols 16:24
            jnp.pad(st, ((0, 0), (24, 0))),                # cols 24:32
            jnp.zeros((v_pad - v, f), jnp.float32),        # alignment pad
        ],
        axis=0,
    )                                                      # (V_pad, 32)

    gb = jnp.zeros((8, f), jnp.float32)
    gb = gb.at[0, :].set(params["bn_gamma"].astype(jnp.float32))
    gb = gb.at[1, :].set(params["bn_beta"].astype(jnp.float32))

    slab = jnp.concatenate(
        [table, gb,
         params["gcn_w1"].astype(jnp.float32),
         params["gcn_w2"].astype(jnp.float32)],
        axis=0,
    )                                                      # (V_pad + 72, 32)
    meta = {"vm": vm, "vp": vp, "vs": vs, "v_pad": v_pad}
    return slab, meta


def pack_indices(member, state, party, meta):
    """Offset indices into the packed table.  Hoist this out of the hot path
    whenever the node set is static across forwards (it is here)."""
    vm, vp = meta["vm"], meta["vp"]
    return jnp.stack(
        [
            member.astype(jnp.int32),
            party.astype(jnp.int32) + vm,
            state.astype(jnp.int32) + vm + vp,
        ],
        axis=1,
    )                                                      # (N, 3)


def member_gcn_forward(idx, adjacent_matrix_hat, slab, meta):
    n = idx.shape[0]
    f = F_DIM
    v_pad = meta["v_pad"]
    a = adjacent_matrix_hat.astype(jnp.float32)

    vmem = pl.BlockSpec(memory_space=pltpu.MemorySpace.VMEM)

    # Single grid-less invocation => no pipelining / double-buffering term.
    # Size the limit from the actual residents + in-kernel temporaries,
    # floored at 2 MiB and capped at the 32 MiB scoped default.
    def tile_bytes(r, c):
        return 4 * (-(-r // 8) * 8) * (-(-c // 128) * 128)

    resident = (tile_bytes(n, 3) + tile_bytes(slab.shape[0], f)
                + tile_bytes(n, n) + tile_bytes(n, f))
    temporaries = 12 * tile_bytes(n, max(v_pad, f))
    vmem_limit = int(min(max(resident + temporaries, 2 << 20), 32 << 20))

    return pl.pallas_call(
        functools.partial(member_gcn_kernel, v_pad=v_pad),
        out_shape=jax.ShapeDtypeStruct((n, f), jnp.float32),
        in_specs=[vmem, vmem, vmem],
        out_specs=vmem,
        compiler_params=pltpu.CompilerParams(vmem_limit_bytes=vmem_limit),
    )(idx, slab, a)


def init_params(key, member_size, state_size, party_size):
    k = jax.random.split(key, 5)
    params = {
        # nn.Embedding default init: N(0, 1)
        "member_embedding": jax.random.normal(k[0], (member_size, 16), jnp.float32),
        "party_embedding": jax.random.normal(k[1], (party_size, 8), jnp.float32),
        "state_embedding": jax.random.normal(k[2], (state_size, 8), jnp.float32),
        # BatchNorm1d affine params (gamma=1, beta=0 at init)
        "bn_gamma": jnp.ones((32,), jnp.float32),
        "bn_beta": jnp.zeros((32,), jnp.float32),
        # GCN Linear weights, PyTorch layout [out_features, in_features]
        "gcn_w1": jax.random.normal(k[3], (32, 32), jnp.float32) * 0.1,
        "gcn_w2": jax.random.normal(k[4], (32, 32), jnp.float32) * 0.1,
    }
    return params


if __name__ == "__main__":
    key = jax.random.PRNGKey(0)
    k_params, k_mem, k_st, k_pt, k_adj = jax.random.split(key, 5)

    member_size, state_size, party_size = 20, 10, 3
    n_nodes = 8  # number of legislators in this forward pass

    params = init_params(k_params, member_size, state_size, party_size)

    member = jax.random.randint(k_mem, (n_nodes,), 0, member_size, jnp.int32)
    state = jax.random.randint(k_st, (n_nodes,), 0, state_size, jnp.int32)
    party = jax.random.randint(k_pt, (n_nodes,), 0, party_size, jnp.int32)

    # symmetric non-negative adjacency (self-loops added inside normalize)
    raw = jax.random.uniform(k_adj, (n_nodes, n_nodes), jnp.float32)
    adjacent_matrix_hat = (raw + raw.T) * 0.5

    # One-time prep, hoisted out of the per-forward path.
    slab, meta = pack_params(params)
    idx = pack_indices(member, state, party, meta)

    fwd = jax.jit(functools.partial(member_gcn_forward, meta=meta))
    out = fwd(idx, adjacent_matrix_hat, slab)
    jax.block_until_ready(out)

    assert out.shape == (n_nodes, 32) and out.dtype == jnp.float32
    assert bool(jnp.all(jnp.isfinite(out)))
    print("KERNEL_OK")
</pallas_src>

<mosaic_0001>
module attributes {stable_mosaic.version = 11 : i64} {
  func.func @member_gcn_kernel(%arg0: memref<8x3xi32, #tpu.memory_space<vmem>>, %arg1: memref<112x32xf32, #tpu.memory_space<vmem>>, %arg2: memref<8x8xf32, #tpu.memory_space<vmem>>, %arg3: memref<8x32xf32, #tpu.memory_space<vmem>>) attributes {dimension_semantics = [], scalar_prefetch = 0 : i64, scratch_operands = 0 : i64, tpu.core_type = #tpu.core_type<tc>} {
    %c0 = arith.constant 0 : index
    %c0_0 = arith.constant 0 : index
    %0 = vector.load %arg0[%c0, %c0_0] : memref<8x3xi32, #tpu.memory_space<vmem>>, vector<8x3xi32>
    %c0_1 = arith.constant 0 : index
    %c0_2 = arith.constant 0 : index
    %1 = vector.load %arg2[%c0_1, %c0_2] : memref<8x8xf32, #tpu.memory_space<vmem>>, vector<8x8xf32>
    %c0_3 = arith.constant 0 : index
    %c0_4 = arith.constant 0 : index
    %2 = vector.load %arg1[%c0_3, %c0_4] : memref<112x32xf32, #tpu.memory_space<vmem>>, vector<40x32xf32>
    %c40 = arith.constant 40 : index
    %c0_5 = arith.constant 0 : index
    %3 = vector.load %arg1[%c40, %c0_5] : memref<112x32xf32, #tpu.memory_space<vmem>>, vector<8x32xf32>
    %4 = vector.extract_strided_slice %3 {offsets = [0, 0], sizes = [1, 32], strides = [1, 1]} : vector<8x32xf32> to vector<1x32xf32>
    %5 = vector.extract_strided_slice %3 {offsets = [1, 0], sizes = [1, 32], strides = [1, 1]} : vector<8x32xf32> to vector<1x32xf32>
    %c48 = arith.constant 48 : index
    %c0_6 = arith.constant 0 : index
    %6 = vector.load %arg1[%c48, %c0_6] : memref<112x32xf32, #tpu.memory_space<vmem>>, vector<32x32xf32>
    %c80 = arith.constant 80 : index
    %c0_7 = arith.constant 0 : index
    %7 = vector.load %arg1[%c80, %c0_7] : memref<112x32xf32, #tpu.memory_space<vmem>>, vector<32x32xf32>
    %8 = tpu.iota {dimensions = array<i32: 1>} : vector<8x40xi32>
    %9 = vector.extract_strided_slice %0 {offsets = [0, 0], sizes = [8, 1], strides = [1, 1]} : vector<8x3xi32> to vector<8x1xi32>
    %10 = vector.broadcast %9 : vector<8x1xi32> to vector<8x40xi32>
    %11 = arith.cmpi eq, %8, %10 : vector<8x40xi32>
    %12 = vector.extract_strided_slice %0 {offsets = [0, 1], sizes = [8, 1], strides = [1, 1]} : vector<8x3xi32> to vector<8x1xi32>
    %13 = vector.broadcast %12 : vector<8x1xi32> to vector<8x40xi32>
    %14 = arith.cmpi eq, %8, %13 : vector<8x40xi32>
    %15 = arith.ori %11, %14 : vector<8x40xi1>
    %16 = vector.extract_strided_slice %0 {offsets = [0, 2], sizes = [8, 1], strides = [1, 1]} : vector<8x3xi32> to vector<8x1xi32>
    %17 = vector.broadcast %16 : vector<8x1xi32> to vector<8x40xi32>
    %18 = arith.cmpi eq, %8, %17 : vector<8x40xi32>
    %19 = arith.ori %15, %18 : vector<8x40xi1>
    %cst = arith.constant 1.000000e+00 : f32
    %cst_8 = arith.constant 0.000000e+00 : f32
    %20 = vector.broadcast %cst : f32 to vector<8x40xf32>
    %21 = vector.broadcast %cst_8 : f32 to vector<8x40xf32>
    %22 = arith.select %19, %20, %21 : vector<8x40xi1>, vector<8x40xf32>
    %cst_9 = arith.constant dense<0.000000e+00> : vector<8x32xf32>
    %23 = tpu.matmul %22, %2, %cst_9 {dimension_numbers = #tpu.dot_dimension_numbers<[1], [0], [0], [1], [0, 0, 1, 1], [], []>, precision = #tpu.contract_precision<fp32>} : vector<8x40xf32>, vector<40x32xf32>, vector<8x32xf32> -> vector<8x32xf32>
    %cst_10 = arith.constant dense<0.000000e+00> : vector<32xf32>
    %24 = vector.multi_reduction <add>, %23, %cst_10 [0] : vector<8x32xf32> to vector<32xf32>
    %25 = vector.shape_cast %24 : vector<32xf32> to vector<1x32xf32>
    %cst_11 = arith.constant 8.000000e+00 : f32
    %26 = vector.broadcast %cst_11 : f32 to vector<1x32xf32>
    %27 = arith.divf %25, %26 : vector<1x32xf32>
    %28 = vector.broadcast %27 : vector<1x32xf32> to vector<8x32xf32>
    %29 = arith.subf %23, %28 : vector<8x32xf32>
    %30 = arith.mulf %29, %29 : vector<8x32xf32>
    %cst_12 = arith.constant dense<0.000000e+00> : vector<32xf32>
    %31 = vector.multi_reduction <add>, %30, %cst_12 [0] : vector<8x32xf32> to vector<32xf32>
    %32 = vector.shape_cast %31 : vector<32xf32> to vector<1x32xf32>
    %cst_13 = arith.constant 8.000000e+00 : f32
    %33 = vector.broadcast %cst_13 : f32 to vector<1x32xf32>
    %34 = arith.divf %32, %33 : vector<1x32xf32>
    %cst_14 = arith.constant 9.99999974E-6 : f32
    %35 = vector.broadcast %cst_14 : f32 to vector<1x32xf32>
    %36 = arith.addf %34, %35 : vector<1x32xf32>
    %37 = math.rsqrt %36 : vector<1x32xf32>
    %38 = vector.broadcast %37 : vector<1x32xf32> to vector<8x32xf32>
    %39 = arith.mulf %29, %38 : vector<8x32xf32>
    %40 = vector.broadcast %4 : vector<1x32xf32> to vector<8x32xf32>
    %41 = arith.mulf %39, %40 : vector<8x32xf32>
    %42 = vector.broadcast %5 : vector<1x32xf32> to vector<8x32xf32>
    %43 = arith.addf %41, %42 : vector<8x32xf32>
    %cst_15 = arith.constant dense<0.000000e+00> : vector<8xf32>
    %44 = vector.multi_reduction <add>, %1, %cst_15 [1] : vector<8x8xf32> to vector<8xf32>
    %45 = vector.shape_cast %44 : vector<8xf32> to vector<8x1xf32>
    %cst_16 = arith.constant 1.000000e+00 : f32
    %46 = vector.broadcast %cst_16 : f32 to vector<8x1xf32>
    %47 = arith.addf %45, %46 : vector<8x1xf32>
    %48 = math.rsqrt %47 : vector<8x1xf32>
    %49 = vector.broadcast %48 : vector<8x1xf32> to vector<8x32xf32>
    %50 = arith.mulf %49, %43 : vector<8x32xf32>
    %cst_17 = arith.constant dense<0.000000e+00> : vector<8x32xf32>
    %51 = tpu.matmul %1, %50, %cst_17 {dimension_numbers = #tpu.dot_dimension_numbers<[1], [0], [0], [1], [0, 0, 1, 1], [], []>, precision = #tpu.contract_precision<fp32>} : vector<8x8xf32>, vector<8x32xf32>, vector<8x32xf32> -> vector<8x32xf32>
    %52 = arith.addf %51, %50 : vector<8x32xf32>
    %53 = vector.broadcast %48 : vector<8x1xf32> to vector<8x32xf32>
    %54 = arith.mulf %53, %52 : vector<8x32xf32>
    %cst_18 = arith.constant dense<0.000000e+00> : vector<8x32xf32>
    %55 = tpu.matmul %54, %6, %cst_18 {dimension_numbers = #tpu.dot_dimension_numbers<[1], [1], [0], [0], [0, 0, 1, 0], [], []>, precision = #tpu.contract_precision<fp32>} : vector<8x32xf32>, vector<32x32xf32>, vector<8x32xf32> -> vector<8x32xf32>
    %cst_19 = arith.constant 0.000000e+00 : f32
    %56 = vector.broadcast %cst_19 : f32 to vector<8x32xf32>
    %57 = arith.maximumf %55, %56 : vector<8x32xf32>
    %58 = vector.broadcast %48 : vector<8x1xf32> to vector<8x32xf32>
    %59 = arith.mulf %58, %57 : vector<8x32xf32>
    %cst_20 = arith.constant dense<0.000000e+00> : vector<8x32xf32>
    %60 = tpu.matmul %1, %59, %cst_20 {dimension_numbers = #tpu.dot_dimension_numbers<[1], [0], [0], [1], [0, 0, 1, 1], [], []>, precision = #tpu.contract_precision<fp32>} : vector<8x8xf32>, vector<8x32xf32>, vector<8x32xf32> -> vector<8x32xf32>
    %61 = arith.addf %60, %59 : vector<8x32xf32>
    %62 = vector.broadcast %48 : vector<8x1xf32> to vector<8x32xf32>
    %63 = arith.mulf %62, %61 : vector<8x32xf32>
    %cst_21 = arith.constant dense<0.000000e+00> : vector<8x32xf32>
    %64 = tpu.matmul %63, %7, %cst_21 {dimension_numbers = #tpu.dot_dimension_numbers<[1], [1], [0], [0], [0, 0, 1, 0], [], []>, precision = #tpu.contract_precision<fp32>} : vector<8x32xf32>, vector<32x32xf32>, vector<8x32xf32> -> vector<8x32xf32>
    %c0_22 = arith.constant 0 : index
    %c0_23 = arith.constant 0 : index
    %65 = vector.load %arg3[%c0_22, %c0_23] : memref<8x32xf32, #tpu.memory_space<vmem>>, vector<8x32xf32>
    tpu.vector_store %arg3[%c0_22, %c0_23], %64 {strides = array<i32>} : memref<8x32xf32, #tpu.memory_space<vmem>>, vector<8x32xf32>,
    return
  }
}

</mosaic_0001>

<llo_original>
// kernel: member_gcn_forward.1
$region0: #{member_gcn_forward.1}
  #allocation0 [shape = 'u32[]', space=smem, size = 0x4, offset = 0x4, fixed_abs, tag = 'smem constant byte address 0x4 - core index']
  #allocation1 [shape = 'u32[144,128]{1,0:T(1,128)}', space=vmem, size = 0x12000, scoped, tag = 'internal scratch']
  %s0 = inlined_call_operand.vmem [shape: s32[8,3], index: 0, kind: input, shape index: {}]
  %s1 = inlined_call_operand.vmem [shape: f32[112,32], index: 1, kind: input, shape index: {}]
  %s2 = inlined_call_operand.vmem [shape: f32[8,8], index: 2, kind: input, shape index: {}]
  %s3 = inlined_call_operand.hbm [shape: f32[8,32], index: 3, kind: output, shape index: {}]
  %s4 = sld [smem:[#allocation0]]
  $region22: #{member_gcn_forward.1} parent=0
    _
  %s6 = ssub.s32 1, %s4
  %s7 = scalar_select 0, %s6, %s4
  $region1: #{member_gcn_forward.1} parent=0
    #allocation2 [shape = 'u8[4096]{0}', space=vmem, size = 0x1000, scoped, tag = 'output window, operand 0, single buffered']
    #allocation3 [shape = 's32[1]{0}', space=sflag, size = 0x4, scoped, tag = 'scoped memory for member_gcn_forward.1']
    %8 = vsyncpa [#allocation3], 0
    // Predicated region
    $region2: #{member_gcn_forward.1} parent=1 // pred_check
      _
    $region3: #{member_gcn_forward.1} parent=1 // pred_check_branch
      %10 = sbr.rel (0) target = $region5
    $region4: #{member_gcn_forward.1} parent=1 // pred_region
      _
    $region5: #{member_gcn_forward.1} parent=1 // pred_fallthru
      _
    // Predicated region
    $region6: #{member_gcn_forward.1} parent=1 // pred_check
      _
    $region7: #{member_gcn_forward.1} parent=1 // pred_check_branch
      %12 = sbr.rel (0) target = $region9
    $region8: #{member_gcn_forward.1} parent=1 // pred_region
      _
    $region9: #{member_gcn_forward.1} parent=1 // pred_fallthru
      _
    // Predicated region
    $region10: #{member_gcn_forward.1} parent=1 // pred_check
      _
    $region11: #{member_gcn_forward.1} parent=1 // pred_check_branch
      %14 = sbr.rel (0) target = $region13
    $region12: #{member_gcn_forward.1} parent=1 // pred_region
      _
    $region13: #{member_gcn_forward.1} parent=1 // pred_fallthru
      _
    %v15 = vld [vmem:[%s0] sm:$0xff]
    %v16 = vld [vmem:[%s2] sm:$0xff]
    %v17 = vld [vmem:[%s1] sm:$0xff]
    %v18 = vld [vmem:[%s1 + $0x8] sm:$0xff]
    %v19 = vld [vmem:[%s1 + $0x10] sm:$0xff]
    %v20 = vld [vmem:[%s1 + $0x18] sm:$0xff]
    %v21 = vld [vmem:[%s1 + $0x20] sm:$0xff]
    %v22 = vld [vmem:[%s1 + $0x28] sm:$0xff]
    %v23 = vld [vmem:[%s1 + $0x30] sm:$0xff]
    %v24 = vld [vmem:[%s1 + $0x38] sm:$0xff]
    %v25 = vld [vmem:[%s1 + $0x40] sm:$0xff]
    %v26 = vld [vmem:[%s1 + $0x48] sm:$0xff]
    %v27 = vld [vmem:[%s1 + $0x50] sm:$0xff]
    %v28 = vld [vmem:[%s1 + $0x58] sm:$0xff]
    %v29 = vld [vmem:[%s1 + $0x60] sm:$0xff]
    %v30 = vld [vmem:[%s1 + $0x68] sm:$0xff]
    %v31 = vlaneseq
    %v32 = vand.u32 %v31, 127
    %33 = vset.pattern.permute.xlu0 0
    %34 = vperm.xlu0 %33, %v15
    %v35 = vpop.permute.xlu0 %34
    %vm36 = vcmp.eq.s32.totalorder %v32, %v35
    %37 = vset.pattern.permute.xlu0 1
    %38 = vperm.xlu0 %37, %v15
    %v39 = vpop.permute.xlu0 %38
    %vm40 = vcmp.eq.s32.totalorder %v32, %v39
    %vm41 = vmor %vm36, %vm40
    %42 = vset.pattern.permute.xlu0 2
    %43 = vperm.xlu0 %42, %v15
    %v44 = vpop.permute.xlu0 %43
    %vm45 = vcmp.eq.s32.totalorder %v32, %v44
    %vm46 = vmor %vm41, %vm45
    %v47 = vsel %vm46, 1.0, 0.0
    %vm48 = vcmask 326656
    %v50 = vsel %vm48, %v47, 0
    %52 = vmatprep.subr.mxu0 0.0
    %v53 = vand.u32 %v17, 4294901760
    %54 = vmatpush1.msra.mxu0 %v53
    %55 = vmatprep.subr.mxu0 0.0
    %v56 = vand.u32 %v18, 4294901760
    %57 = vmatpush1.msra.mxu0 %v56
    %58 = vmatprep.subr.mxu0 0.0
    %v59 = vand.u32 %v19, 4294901760
    %60 = vmatpush1.msra.mxu0 %v59
    %61 = vmatprep.subr.mxu0 0.0
    %v62 = vand.u32 %v20, 4294901760
    %63 = vmatpush1.msra.mxu0 %v62
    %64 = vmatprep.subr.mxu0 0.0
    %v65 = vand.u32 %v21, 4294901760
    %66 = vmatpush1.msra.mxu0 %v65
    %67 = vmatprep.subr.mxu0 0.0
    %68 = vmatpush1.msra.mxu0 0.0
    %69 = vmatprep.subr.mxu0 0.0
    %70 = vmatpush1.msra.mxu0 0.0
    %71 = vmatprep.subr.mxu0 0.0
    %72 = vmatpush1.msra.mxu0 0.0
    %73 = vmatprep.subr.mxu0 0.0
    %74 = vmatpush1.msra.mxu0 0.0
    %75 = vmatprep.subr.mxu0 0.0
    %76 = vmatpush1.msra.mxu0 0.0
    %77 = vmatprep.subr.mxu0 0.0
    %78 = vmatpush1.msra.mxu0 0.0
    %79 = vmatprep.subr.mxu0 0.0
    %80 = vmatpush1.msra.mxu0 0.0
    %81 = vmatprep.subr.mxu0 0.0
    %82 = vmatpush1.msra.mxu0 0.0
    %83 = vmatprep.subr.mxu0 0.0
    %84 = vmatpush1.msra.mxu0 0.0
    %85 = vmatprep.subr.mxu0 0.0
    %86 = vmatpush1.msra.mxu0 0.0
    %87 = vmatprep.subr.mxu0 0.0
    %88 = vmatpush1.msra.mxu0 0.0
    %89 = vmatprep.subr.mxu0 0.0
    %90 = vmatpush1.msra.mxu0 0.0
    %91 = vmatprep.subr.mxu0 0.0
    %92 = vmatpush1.msra.mxu0 0.0
    %93 = vmatprep.subr.mxu0 0.0
    %94 = vmatpush1.msra.mxu0 0.0
    %95 = vmatprep.subr.mxu0 0.0
    %96 = vmatpush1.msra.mxu0 0.0
    %97 = vmatprep.subr.mxu0 0.0
    %98 = vmatpush1.msra.mxu0 0.0
    %99 = vmatprep.subr.mxu0 0.0
    %100 = vmatpush1.msra.mxu0 0.0
    %101 = vmatprep.subr.mxu0 0.0
    %102 = vmatpush1.msra.mxu0 0.0
    %103 = vmatprep.subr.mxu0 0.0
    %104 = vmatpush1.msra.mxu0 0.0
    %105 = vmatprep.subr.mxu0 0.0
    %106 = vmatpush1.msra.mxu0 0.0
    %107 = vmatprep.subr.mxu0 0.0
    %108 = vmatpush1.msra.mxu0 0.0
    %109 = vmatprep.subr.mxu0 0.0
    %110 = vmatpush1.msra.mxu0 0.0
    %111 = vmatprep.subr.mxu0 0.0
    %112 = vmatpush1.msra.mxu0 0.0
    %113 = vmatprep.subr.mxu0 0.0
    %114 = vmatpush1.msra.mxu0 0.0
    %115 = vmatprep.subr.mxu0 0.0
    %116 = vmatpush1.msra.mxu0 0.0
    %117 = vmatprep.subr.mxu0 0.0
    %118 = vmatpush1.msra.mxu0 0.0
    %119 = vmatprep.subr.mxu0 0.0
    %120 = vmatpush1.msra.mxu0 0.0
    %121 = vmatprep.mubr.f32.mxu0 0.0
    %v122 = vand.u32 %v50, 4294901760
    %v123 = vsub.f32 %v50, %v122
    %v124 = vand.u32 %v123, 4294901760
    %v125 = vsub.f32 %v123, %v124
    %v126 = vand.u32 %v125, 4294901760
    %127 = vmatmul.mubr.f32.gmra.mrb[0].mxu0 %v126
    %v128 = vpop.f32.mrb[0].mxu0
    %v129 = vadd.f32 0.0, %v128
    %v130 = vpop.f32.mrb[0].mxu0
    %131 = vdwg.mxu0
    %132 = vmatprep.subr.mxu0 0.0
    %v133 = vand.u32 %v17, 4294901760
    %v134 = vsub.f32 %v17, %v133
    %v135 = vand.u32 %v134, 4294901760
    %v136 = vsub.f32 %v134, %v135
    %v137 = vand.u32 %v136, 4294901760
    %138 = vmatpush1.msra.mxu0 %v137
    %139 = vmatprep.subr.mxu0 0.0
    %v140 = vand.u32 %v18, 4294901760
    %v141 = vsub.f32 %v18, %v140
    %v142 = vand.u32 %v141, 4294901760
    %v143 = vsub.f32 %v141, %v142
    %v144 = vand.u32 %v143, 4294901760
    %145 = vmatpush1.msra.mxu0 %v144
    %146 = vmatprep.subr.mxu0 0.0
    %v147 = vand.u32 %v19, 4294901760
    %v148 = vsub.f32 %v19, %v147
    %v149 = vand.u32 %v148, 4294901760
    %v150 = vsub.f32 %v148, %v149
    %v151 = vand.u32 %v150, 4294901760
    %152 = vmatpush1.msra.mxu0 %v151
    %153 = vmatprep.subr.mxu0 0.0
    %v154 = vand.u32 %v20, 4294901760
    %v155 = vsub.f32 %v20, %v154
    %v156 = vand.u32 %v155, 4294901760
    %v157 = vsub.f32 %v155, %v156
    %v158 = vand.u32 %v157, 4294901760
    %159 = vmatpush1.msra.mxu0 %v158
    %160 = vmatprep.subr.mxu0 0.0
    %v161 = vand.u32 %v21, 4294901760
    %v162 = vsub.f32 %v21, %v161
    %v163 = vand.u32 %v162, 4294901760
    %v164 = vsub.f32 %v162, %v163
    %v165 = vand.u32 %v164, 4294901760
    %166 = vmatpush1.msra.mxu0 %v165
    %167 = vmatprep.subr.mxu0 0.0
    %168 = vmatpush1.msra.mxu0 0.0
    %169 = vmatprep.subr.mxu0 0.0
    %170 = vmatpush1.msra.mxu0 0.0
    %171 = vmatprep.subr.mxu0 0.0
    %172 = vmatpush1.msra.mxu0 0.0
    %173 = vmatprep.subr.mxu0 0.0
    %174 = vmatpush1.msra.mxu0 0.0
    %175 = vmatprep.subr.mxu0 0.0
    %176 = vmatpush1.msra.mxu0 0.0
    %177 = vmatprep.subr.mxu0 0.0
    %178 = vmatpush1.msra.mxu0 0.0
    %179 = vmatprep.subr.mxu0 0.0
    %180 = vmatpush1.msra.mxu0 0.0
    %181 = vmatprep.subr.mxu0 0.0
    %182 = vmatpush1.msra.mxu0 0.0
    %183 = vmatprep.subr.mxu0 0.0
    %184 = vmatpush1.msra.mxu0 0.0
    %185 = vmatprep.subr.mxu0 0.0
    %186 = vmatpush1.msra.mxu0 0.0
    %187 = vmatprep.subr.mxu0 0.0
    %188 = vmatpush1.msra.mxu0 0.0
    %189 = vmatprep.subr.mxu0 0.0
    %190 = vmatpush1.msra.mxu0 0.0
    %191 = vmatprep.subr.mxu0 0.0
    %192 = vmatpush1.msra.mxu0 0.0
    %193 = vmatprep.subr.mxu0 0.0
    %194 = vmatpush1.msra.mxu0 0.0
    %195 = vmatprep.subr.mxu0 0.0
    %196 = vmatpush1.msra.mxu0 0.0
    %197 = vmatprep.subr.mxu0 0.0
    %198 = vmatpush1.msra.mxu0 0.0
    %199 = vmatprep.subr.mxu0 0.0
    %200 = vmatpush1.msra.mxu0 0.0
    %201 = vmatprep.subr.mxu0 0.0
    %202 = vmatpush1.msra.mxu0 0.0
    %203 = vmatprep.subr.mxu0 0.0
    %204 = vmatpush1.msra.mxu0 0.0
    %205 = vmatprep.subr.mxu0 0.0
    %206 = vmatpush1.msra.mxu0 0.0
    %207 = vmatprep.subr.mxu0 0.0
    %208 = vmatpush1.msra.mxu0 0.0
    %209 = vmatprep.subr.mxu0 0.0
    %210 = vmatpush1.msra.mxu0 0.0
    %211 = vmatprep.subr.mxu0 0.0
    %212 = vmatpush1.msra.mxu0 0.0
    %213 = vmatprep.subr.mxu0 0.0
    %214 = vmatpush1.msra.mxu0 0.0
    %215 = vmatprep.subr.mxu0 0.0
    %216 = vmatpush1.msra.mxu0 0.0
    %217 = vmatprep.subr.mxu0 0.0
    %218 = vmatpush1.msra.mxu0 0.0
    %219 = vmatprep.subr.mxu0 0.0
    %220 = vmatpush1.msra.mxu0 0.0
    %221 = vmatprep.mubr.f32.mxu0 0.0
    %v222 = vand.u32 %v50, 4294901760
    %223 = vmatmul.mubr.f32.gmra.mrb[0].mxu0 %v222
    %v224 = vpop.f32.mrb[0].mxu0
    %v225 = vadd.f32 %v129, %v224
    %v226 = vpop.f32.mrb[0].mxu0
    %227 = vdwg.mxu0
    %228 = vmatprep.subr.mxu0 0.0
    %v229 = vand.u32 %v17, 4294901760
    %v230 = vsub.f32 %v17, %v229
    %231 = vmatpush1.msra.mxu0 %v230
    %232 = vmatprep.subr.mxu0 0.0
    %v233 = vand.u32 %v18, 4294901760
    %v234 = vsub.f32 %v18, %v233
    %235 = vmatpush1.msra.mxu0 %v234
    %236 = vmatprep.subr.mxu0 0.0
    %v237 = vand.u32 %v19, 4294901760
    %v238 = vsub.f32 %v19, %v237
    %239 = vmatpush1.msra.mxu0 %v238
    %240 = vmatprep.subr.mxu0 0.0
    %v241 = vand.u32 %v20, 4294901760
    %v242 = vsub.f32 %v20, %v241
    %243 = vmatpush1.msra.mxu0 %v242
    %244 = vmatprep.subr.mxu0 0.0
    %v245 = vand.u32 %v21, 4294901760
    %v246 = vsub.f32 %v21, %v245
    %247 = vmatpush1.msra.mxu0 %v246
    %248 = vmatprep.subr.mxu0 0.0
    %249 = vmatpush1.msra.mxu0 0.0
    %250 = vmatprep.subr.mxu0 0.0
    %251 = vmatpush1.msra.mxu0 0.0
    %252 = vmatprep.subr.mxu0 0.0
    %253 = vmatpush1.msra.mxu0 0.0
    %254 = vmatprep.subr.mxu0 0.0
    %255 = vmatpush1.msra.mxu0 0.0
    %256 = vmatprep.subr.mxu0 0.0
    %257 = vmatpush1.msra.mxu0 0.0
    %258 = vmatprep.subr.mxu0 0.0
    %259 = vmatpush1.msra.mxu0 0.0
    %260 = vmatprep.subr.mxu0 0.0
    %261 = vmatpush1.msra.mxu0 0.0
    %262 = vmatprep.subr.mxu0 0.0
    %263 = vmatpush1.msra.mxu0 0.0
    %264 = vmatprep.subr.mxu0 0.0
    %265 = vmatpush1.msra.mxu0 0.0
    %266 = vmatprep.subr.mxu0 0.0
    %267 = vmatpush1.msra.mxu0 0.0
    %268 = vmatprep.subr.mxu0 0.0
    %269 = vmatpush1.msra.mxu0 0.0
    %270 = vmatprep.subr.mxu0 0.0
    %271 = vmatpush1.msra.mxu0 0.0
    %272 = vmatprep.subr.mxu0 0.0
    %273 = vmatpush1.msra.mxu0 0.0
    %274 = vmatprep.subr.mxu0 0.0
    %275 = vmatpush1.msra.mxu0 0.0
    %276 = vmatprep.subr.mxu0 0.0
    %277 = vmatpush1.msra.mxu0 0.0
    %278 = vmatprep.subr.mxu0 0.0
    %279 = vmatpush1.msra.mxu0 0.0
    %280 = vmatprep.subr.mxu0 0.0
    %281 = vmatpush1.msra.mxu0 0.0
    %282 = vmatprep.subr.mxu0 0.0
    %283 = vmatpush1.msra.mxu0 0.0
    %284 = vmatprep.subr.mxu0 0.0
    %285 = vmatpush1.msra.mxu0 0.0
    %286 = vmatprep.subr.mxu0 0.0
    %287 = vmatpush1.msra.mxu0 0.0
    %288 = vmatprep.subr.mxu0 0.0
    %289 = vmatpush1.msra.mxu0 0.0
    %290 = vmatprep.subr.mxu0 0.0
    %291 = vmatpush1.msra.mxu0 0.0
    %292 = vmatprep.subr.mxu0 0.0
    %293 = vmatpush1.msra.mxu0 0.0
    %294 = vmatprep.subr.mxu0 0.0
    %295 = vmatpush1.msra.mxu0 0.0
    %296 = vmatprep.subr.mxu0 0.0
    %297 = vmatpush1.msra.mxu0 0.0
    %298 = vmatprep.subr.mxu0 0.0
    %299 = vmatpush1.msra.mxu0 0.0
    %300 = vmatprep.subr.mxu0 0.0
    %301 = vmatpush1.msra.mxu0 0.0
    %302 = vmatprep.mubr.f32.mxu0 0.0
    %v303 = vand.u32 %v50, 4294901760
    %v304 = vsub.f32 %v50, %v303
    %305 = vmatmul.mubr.f32.gmra.mrb[0].mxu0 %v304
    %v306 = vpop.f32.mrb[0].mxu0
    %v307 = vadd.f32 %v225, %v306
    %v308 = vpop.f32.mrb[0].mxu0
    %309 = vdwg.mxu0
    %310 = vmatprep.subr.mxu0 0.0
    %v311 = vand.u32 %v17, 4294901760
    %312 = vmatpush1.msra.mxu0 %v311
    %313 = vmatprep.subr.mxu0 0.0
    %v314 = vand.u32 %v18, 4294901760
    %315 = vmatpush1.msra.mxu0 %v314
    %316 = vmatprep.subr.mxu0 0.0
    %v317 = vand.u32 %v19, 4294901760
    %318 = vmatpush1.msra.mxu0 %v317
    %319 = vmatprep.subr.mxu0 0.0
    %v320 = vand.u32 %v20, 4294901760
    %321 = vmatpush1.msra.mxu0 %v320
    %322 = vmatprep.subr.mxu0 0.0
    %v323 = vand.u32 %v21, 4294901760
    %324 = vmatpush1.msra.mxu0 %v323
    %325 = vmatprep.subr.mxu0 0.0
    %326 = vmatpush1.msra.mxu0 0.0
    %327 = vmatprep.subr.mxu0 0.0
    %328 = vmatpush1.msra.mxu0 0.0
    %329 = vmatprep.subr.mxu0 0.0
    %330 = vmatpush1.msra.mxu0 0.0
    %331 = vmatprep.subr.mxu0 0.0
    %332 = vmatpush1.msra.mxu0 0.0
    %333 = vmatprep.subr.mxu0 0.0
    %334 = vmatpush1.msra.mxu0 0.0
    %335 = vmatprep.subr.mxu0 0.0
    %336 = vmatpush1.msra.mxu0 0.0
    %337 = vmatprep.subr.mxu0 0.0
    %338 = vmatpush1.msra.mxu0 0.0
    %339 = vmatprep.subr.mxu0 0.0
    %340 = vmatpush1.msra.mxu0 0.0
    %341 = vmatprep.subr.mxu0 0.0
    %342 = vmatpush1.msra.mxu0 0.0
    %343 = vmatprep.subr.mxu0 0.0
    %344 = vmatpush1.msra.mxu0 0.0
    %345 = vmatprep.subr.mxu0 0.0
    %346 = vmatpush1.msra.mxu0 0.0
    %347 = vmatprep.subr.mxu0 0.0
    %348 = vmatpush1.msra.mxu0 0.0
    %349 = vmatprep.subr.mxu0 0.0
    %350 = vmatpush1.msra.mxu0 0.0
    %351 = vmatprep.subr.mxu0 0.0
    %352 = vmatpush1.msra.mxu0 0.0
    %353 = vmatprep.subr.mxu0 0.0
    %354 = vmatpush1.msra.mxu0 0.0
    %355 = vmatprep.subr.mxu0 0.0
    %356 = vmatpush1.msra.mxu0 0.0
    %357 = vmatprep.subr.mxu0 0.0
    %358 = vmatpush1.msra.mxu0 0.0
    %359 = vmatprep.subr.mxu0 0.0
    %360 = vmatpush1.msra.mxu0 0.0
    %361 = vmatprep.subr.mxu0 0.0
    %362 = vmatpush1.msra.mxu0 0.0
    %363 = vmatprep.subr.mxu0 0.0
    %364 = vmatpush1.msra.mxu0 0.0
    %365 = vmatprep.subr.mxu0 0.0
    %366 = vmatpush1.msra.mxu0 0.0
    %367 = vmatprep.subr.mxu0 0.0
    %368 = vmatpush1.msra.mxu0 0.0
    %369 = vmatprep.subr.mxu0 0.0
    %370 = vmatpush1.msra.mxu0 0.0
    %371 = vmatprep.subr.mxu0 0.0
    %372 = vmatpush1.msra.mxu0 0.0
    %373 = vmatprep.subr.mxu0 0.0
    %374 = vmatpush1.msra.mxu0 0.0
    %375 = vmatprep.subr.mxu0 0.0
    %376 = vmatpush1.msra.mxu0 0.0
    %377 = vmatprep.subr.mxu0 0.0
    %378 = vmatpush1.msra.mxu0 0.0
    %379 = vmatprep.mubr.f32.mxu0 0.0
    %v380 = vand.u32 %v50, 4294901760
    %v381 = vsub.f32 %v50, %v380
    %v382 = vand.u32 %v381, 4294901760
    %383 = vmatmul.mubr.f32.gmra.mrb[0].mxu0 %v382
    %v384 = vpop.f32.mrb[0].mxu0
    %v385 = vadd.f32 %v307, %v384
    %v386 = vpop.f32.mrb[0].mxu0
    %387 = vdwg.mxu0
    %388 = vmatprep.subr.mxu0 0.0
    %v389 = vand.u32 %v17, 4294901760
    %v390 = vsub.f32 %v17, %v389
    %v391 = vand.u32 %v390, 4294901760
    %392 = vmatpush1.msra.mxu0 %v391
    %393 = vmatprep.subr.mxu0 0.0
    %v394 = vand.u32 %v18, 4294901760
    %v395 = vsub.f32 %v18, %v394
    %v396 = vand.u32 %v395, 4294901760
    %397 = vmatpush1.msra.mxu0 %v396
    %398 = vmatprep.subr.mxu0 0.0
    %v399 = vand.u32 %v19, 4294901760
    %v400 = vsub.f32 %v19, %v399
    %v401 = vand.u32 %v400, 4294901760
    %402 = vmatpush1.msra.mxu0 %v401
    %403 = vmatprep.subr.mxu0 0.0
    %v404 = vand.u32 %v20, 4294901760
    %v405 = vsub.f32 %v20, %v404
    %v406 = vand.u32 %v405, 4294901760
    %407 = vmatpush1.msra.mxu0 %v406
    %408 = vmatprep.subr.mxu0 0.0
    %v409 = vand.u32 %v21, 4294901760
    %v410 = vsub.f32 %v21, %v409
    %v411 = vand.u32 %v410, 4294901760
    %412 = vmatpush1.msra.mxu0 %v411
    %413 = vmatprep.subr.mxu0 0.0
    %414 = vmatpush1.msra.mxu0 0.0
    %415 = vmatprep.subr.mxu0 0.0
    %416 = vmatpush1.msra.mxu0 0.0
    %417 = vmatprep.subr.mxu0 0.0
    %418 = vmatpush1.msra.mxu0 0.0
    %419 = vmatprep.subr.mxu0 0.0
    %420 = vmatpush1.msra.mxu0 0.0
    %421 = vmatprep.subr.mxu0 0.0
    %422 = vmatpush1.msra.mxu0 0.0
    %423 = vmatprep.subr.mxu0 0.0
    %424 = vmatpush1.msra.mxu0 0.0
    %425 = vmatprep.subr.mxu0 0.0
    %426 = vmatpush1.msra.mxu0 0.0
    %427 = vmatprep.subr.mxu0 0.0
    %428 = vmatpush1.msra.mxu0 0.0
    %429 = vmatprep.subr.mxu0 0.0
    %430 = vmatpush1.msra.mxu0 0.0
    %431 = vmatprep.subr.mxu0 0.0
    %432 = vmatpush1.msra.mxu0 0.0
    %433 = vmatprep.subr.mxu0 0.0
    %434 = vmatpush1.msra.mxu0 0.0
    %435 = vmatprep.subr.mxu0 0.0
    %436 = vmatpush1.msra.mxu0 0.0
    %437 = vmatprep.subr.mxu0 0.0
    %438 = vmatpush1.msra.mxu0 0.0
    %439 = vmatprep.subr.mxu0 0.0
    %440 = vmatpush1.msra.mxu0 0.0
    %441 = vmatprep.subr.mxu0 0.0
    %442 = vmatpush1.msra.mxu0 0.0
    %443 = vmatprep.subr.mxu0 0.0
    %444 = vmatpush1.msra.mxu0 0.0
    %445 = vmatprep.subr.mxu0 0.0
    %446 = vmatpush1.msra.mxu0 0.0
    %447 = vmatprep.subr.mxu0 0.0
    %448 = vmatpush1.msra.mxu0 0.0
    %449 = vmatprep.subr.mxu0 0.0
    %450 = vmatpush1.msra.mxu0 0.0
    %451 = vmatprep.subr.mxu0 0.0
    %452 = vmatpush1.msra.mxu0 0.0
    %453 = vmatprep.subr.mxu0 0.0
    %454 = vmatpush1.msra.mxu0 0.0
    %455 = vmatprep.subr.mxu0 0.0
    %456 = vmatpush1.msra.mxu0 0.0
    %457 = vmatprep.subr.mxu0 0.0
    %458 = vmatpush1.msra.mxu0 0.0
    %459 = vmatprep.subr.mxu0 0.0
    %460 = vmatpush1.msra.mxu0 0.0
    %461 = vmatprep.subr.mxu0 0.0
    %462 = vmatpush1.msra.mxu0 0.0
    %463 = vmatprep.subr.mxu0 0.0
    %464 = vmatpush1.msra.mxu0 0.0
    %465 = vmatprep.subr.mxu0 0.0
    %466 = vmatpush1.msra.mxu0 0.0
    %467 = vmatprep.mubr.f32.mxu0 0.0
    %v468 = vand.u32 %v50, 4294901760
    %469 = vmatmul.mubr.f32.gmra.mrb[0].mxu0 %v468
    %v470 = vpop.f32.mrb[0].mxu0
    %v471 = vadd.f32 %v385, %v470
    %v472 = vpop.f32.mrb[0].mxu0
    %473 = vdwg.mxu0
    %474 = vmatprep.subr.mxu0 0.0
    %v475 = vand.u32 %v17, 4294901760
    %476 = vmatpush1.msra.mxu0 %v475
    %477 = vmatprep.subr.mxu0 0.0
    %v478 = vand.u32 %v18, 4294901760
    %479 = vmatpush1.msra.mxu0 %v478
    %480 = vmatprep.subr.mxu0 0.0
    %v481 = vand.u32 %v19, 4294901760
    %482 = vmatpush1.msra.mxu0 %v481
    %483 = vmatprep.subr.mxu0 0.0
    %v484 = vand.u32 %v20, 4294901760
    %485 = vmatpush1.msra.mxu0 %v484
    %486 = vmatprep.subr.mxu0 0.0
    %v487 = vand.u32 %v21, 4294901760
    %488 = vmatpush1.msra.mxu0 %v487
    %489 = vmatprep.subr.mxu0 0.0
    %490 = vmatpush1.msra.mxu0 0.0
    %491 = vmatprep.subr.mxu0 0.0
    %492 = vmatpush1.msra.mxu0 0.0
    %493 = vmatprep.subr.mxu0 0.0
    %494 = vmatpush1.msra.mxu0 0.0
    %495 = vmatprep.subr.mxu0 0.0
    %496 = vmatpush1.msra.mxu0 0.0
    %497 = vmatprep.subr.mxu0 0.0
    %498 = vmatpush1.msra.mxu0 0.0
    %499 = vmatprep.subr.mxu0 0.0
    %500 = vmatpush1.msra.mxu0 0.0
    %501 = vmatprep.subr.mxu0 0.0
    %502 = vmatpush1.msra.mxu0 0.0
    %503 = vmatprep.subr.mxu0 0.0
    %504 = vmatpush1.msra.mxu0 0.0
    %505 = vmatprep.subr.mxu0 0.0
    %506 = vmatpush1.msra.mxu0 0.0
    %507 = vmatprep.subr.mxu0 0.0
    %508 = vmatpush1.msra.mxu0 0.0
    %509 = vmatprep.subr.mxu0 0.0
    %510 = vmatpush1.msra.mxu0 0.0
    %511 = vmatprep.subr.mxu0 0.0
    %512 = vmatpush1.msra.mxu0 0.0
    %513 = vmatprep.subr.mxu0 0.0
    %514 = vmatpush1.msra.mxu0 0.0
    %515 = vmatprep.subr.mxu0 0.0
    %516 = vmatpush1.msra.mxu0 0.0
    %517 = vmatprep.subr.mxu0 0.0
    %518 = vmatpush1.msra.mxu0 0.0
    %519 = vmatprep.subr.mxu0 0.0
    %520 = vmatpush1.msra.mxu0 0.0
    %521 = vmatprep.subr.mxu0 0.0
    %522 = vmatpush1.msra.mxu0 0.0
    %523 = vmatprep.subr.mxu0 0.0
    %524 = vmatpush1.msra.mxu0 0.0
    %525 = vmatprep.subr.mxu0 0.0
    %526 = vmatpush1.msra.mxu0 0.0
    %527 = vmatprep.subr.mxu0 0.0
    %528 = vmatpush1.msra.mxu0 0.0
    %529 = vmatprep.subr.mxu0 0.0
    %530 = vmatpush1.msra.mxu0 0.0
    %531 = vmatprep.subr.mxu0 0.0
    %532 = vmatpush1.msra.mxu0 0.0
    %533 = vmatprep.subr.mxu0 0.0
    %534 = vmatpush1.msra.mxu0 0.0
    %535 = vmatprep.subr.mxu0 0.0
    %536 = vmatpush1.msra.mxu0 0.0
    %537 = vmatprep.subr.mxu0 0.0
    %538 = vmatpush1.msra.mxu0 0.0
    %539 = vmatprep.subr.mxu0 0.0
    %540 = vmatpush1.msra.mxu0 0.0
    %541 = vmatprep.subr.mxu0 0.0
    %542 = vmatpush1.msra.mxu0 0.0
    %543 = vmatprep.mubr.f32.mxu0 0.0
    %v544 = vand.u32 %v50, 4294901760
    %545 = vmatmul.mubr.f32.gmra.mrb[0].mxu0 %v544
    %v546 = vpop.f32.mrb[0].mxu0
    %v547 = vadd.f32 %v471, %v546
    %v548 = vpop.f32.mrb[0].mxu0
    %549 = vdwg.mxu0
    %vm550 = vcmask 261120
    %v551 = vsel %vm550, %v547, 0.0
    %v552 = vrot.slane %v551, 4
    %v553 = vadd.f32 %v551, %v552
    %v554 = vrot.slane %v553, 2
    %v555 = vadd.f32 %v553, %v554
    %v556 = vrot.slane %v555, 1
    %v557 = vadd.f32 %v555, %v556
    %v558 = vrcp.pop 8.0
    %v559 = vmul.f32 %v557, %v558
    %v560 = vsub.f32 %v547, %v559
    %v561 = vmul.f32 %v560, %v560
    %v562 = vsel %vm550, %v561, 0.0
    %v563 = vrot.slane %v562, 4
    %v564 = vadd.f32 %v562, %v563
    %v565 = vrot.slane %v564, 2
    %v566 = vadd.f32 %v564, %v565
    %v567 = vrot.slane %v566, 1
    %v568 = vadd.f32 %v566, %v567
    %v569 = vmul.f32 %v568, %v558
    %v570 = vadd.f32 %v569, 1e-05
    %v571 = vrsqrt.pop %v570
    %v572 = vmul.f32 %v560, %v571
    %v573 = vlaneseq
    %v574 = vshrl.u32 %v573, 7
    %v575 = vsub.s32 0, %v574
    %v576 = vrot.slane %v22, %v575
    %v577 = vmul.f32 %v572, %v576
    %v578 = vlaneseq
    %v579 = vshrl.u32 %v578, 7
    %v580 = vsub.s32 1, %v579
    %v581 = vrot.slane %v22, %v580
    %v582 = vadd.f32 %v577, %v581
    %vm583 = vcmask 64512
    %v584 = vsel %vm583, %v16, 0.0
    %585 = vadd.xlane.f32.xlu0 %v584
    %v586 = vpop.xlane.xlu0 %585
    %v587 = vadd.f32 %v586, 1.0
    %v588 = vrsqrt.pop %v587
    %v589 = vmul.f32 %v588, %v582
    %v591 = vsel %vm583, %v16, 0
    %593 = vmatprep.subr.mxu0 0.0
    %v594 = vand.u32 %v589, 4294901760
    %595 = vmatpush1.msra.mxu0 %v594
    %596 = vmatprep.subr.mxu0 0.0
    %597 = vmatpush1.msra.mxu0 0.0
    %598 = vmatprep.subr.mxu0 0.0
    %599 = vmatpush1.msra.mxu0 0.0
    %600 = vmatprep.subr.mxu0 0.0
    %601 = vmatpush1.msra.mxu0 0.0
    %602 = vmatprep.subr.mxu0 0.0
    %603 = vmatpush1.msra.mxu0 0.0
    %604 = vmatprep.subr.mxu0 0.0
    %605 = vmatpush1.msra.mxu0 0.0
    %606 = vmatprep.subr.mxu0 0.0
    %607 = vmatpush1.msra.mxu0 0.0
    %608 = vmatprep.subr.mxu0 0.0
    %609 = vmatpush1.msra.mxu0 0.0
    %610 = vmatprep.subr.mxu0 0.0
    %611 = vmatpush1.msra.mxu0 0.0
    %612 = vmatprep.subr.mxu0 0.0
    %613 = vmatpush1.msra.mxu0 0.0
    %614 = vmatprep.subr.mxu0 0.0
    %615 = vmatpush1.msra.mxu0 0.0
    %616 = vmatprep.subr.mxu0 0.0
    %617 = vmatpush1.msra.mxu0 0.0
    %618 = vmatprep.subr.mxu0 0.0
    %619 = vmatpush1.msra.mxu0 0.0
    %620 = vmatprep.subr.mxu0 0.0
    %621 = vmatpush1.msra.mxu0 0.0
    %622 = vmatprep.subr.mxu0 0.0
    %623 = vmatpush1.msra.mxu0 0.0
    %624 = vmatprep.subr.mxu0 0.0
    %625 = vmatpush1.msra.mxu0 0.0
    %626 = vmatprep.subr.mxu0 0.0
    %627 = vmatpush1.msra.mxu0 0.0
    %628 = vmatprep.subr.mxu0 0.0
    %629 = vmatpush1.msra.mxu0 0.0
    %630 = vmatprep.subr.mxu0 0.0
    %631 = vmatpush1.msra.mxu0 0.0
    %632 = vmatprep.subr.mxu0 0.0
    %633 = vmatpush1.msra.mxu0 0.0
    %634 = vmatprep.subr.mxu0 0.0
    %635 = vmatpush1.msra.mxu0 0.0
    %636 = vmatprep.subr.mxu0 0.0
    %637 = vmatpush1.msra.mxu0 0.0
    %638 = vmatprep.subr.mxu0 0.0
    %639 = vmatpush1.msra.mxu0 0.0
    %640 = vmatprep.subr.mxu0 0.0
    %641 = vmatpush1.msra.mxu0 0.0
    %642 = vmatprep.subr.mxu0 0.0
    %643 = vmatpush1.msra.mxu0 0.0
    %644 = vmatprep.subr.mxu0 0.0
    %645 = vmatpush1.msra.mxu0 0.0
    %646 = vmatprep.subr.mxu0 0.0
    %647 = vmatpush1.msra.mxu0 0.0
    %648 = vmatprep.subr.mxu0 0.0
    %649 = vmatpush1.msra.mxu0 0.0
    %650 = vmatprep.subr.mxu0 0.0
    %651 = vmatpush1.msra.mxu0 0.0
    %652 = vmatprep.subr.mxu0 0.0
    %653 = vmatpush1.msra.mxu0 0.0
    %654 = vmatprep.subr.mxu0 0.0
    %655 = vmatpush1.msra.mxu0 0.0
    %656 = vmatprep.subr.mxu0 0.0
    %657 = vmatpush1.msra.mxu0 0.0
    %658 = vmatprep.mubr.f32.mxu0 0.0
    %v659 = vand.u32 %v591, 4294901760
    %v660 = vsub.f32 %v591, %v659
    %v661 = vand.u32 %v660, 4294901760
    %v662 = vsub.f32 %v660, %v661
    %v663 = vand.u32 %v662, 4294901760
    %664 = vmatmul.mubr.f32.gmra.mrb[0].mxu0 %v663
    %v665 = vpop.f32.mrb[0].mxu0
    %v666 = vadd.f32 %v589, %v665
    %v667 = vpop.f32.mrb[0].mxu0
    %668 = vdwg.mxu0
    %669 = vmatprep.subr.mxu0 0.0
    %v670 = vand.u32 %v589, 4294901760
    %v671 = vsub.f32 %v589, %v670
    %v672 = vand.u32 %v671, 4294901760
    %v673 = vsub.f32 %v671, %v672
    %v674 = vand.u32 %v673, 4294901760
    %675 = vmatpush1.msra.mxu0 %v674
    %676 = vmatprep.subr.mxu0 0.0
    %677 = vmatpush1.msra.mxu0 0.0
    %678 = vmatprep.subr.mxu0 0.0
    %679 = vmatpush1.msra.mxu0 0.0
    %680 = vmatprep.subr.mxu0 0.0
    %681 = vmatpush1.msra.mxu0 0.0
    %682 = vmatprep.subr.mxu0 0.0
    %683 = vmatpush1.msra.mxu0 0.0
    %684 = vmatprep.subr.mxu0 0.0
    %685 = vmatpush1.msra.mxu0 0.0
    %686 = vmatprep.subr.mxu0 0.0
    %687 = vmatpush1.msra.mxu0 0.0
    %688 = vmatprep.subr.mxu0 0.0
    %689 = vmatpush1.msra.mxu0 0.0
    %690 = vmatprep.subr.mxu0 0.0
    %691 = vmatpush1.msra.mxu0 0.0
    %692 = vmatprep.subr.mxu0 0.0
    %693 = vmatpush1.msra.mxu0 0.0
    %694 = vmatprep.subr.mxu0 0.0
    %695 = vmatpush1.msra.mxu0 0.0
    %696 = vmatprep.subr.mxu0 0.0
    %697 = vmatpush1.msra.mxu0 0.0
    %698 = vmatprep.subr.mxu0 0.0
    %699 = vmatpush1.msra.mxu0 0.0
    %700 = vmatprep.subr.mxu0 0.0
    %701 = vmatpush1.msra.mxu0 0.0
    %702 = vmatprep.subr.mxu0 0.0
    %703 = vmatpush1.msra.mxu0 0.0
    %704 = vmatprep.subr.mxu0 0.0
    %705 = vmatpush1.msra.mxu0 0.0
    %706 = vmatprep.subr.mxu0 0.0
    %707 = vmatpush1.msra.mxu0 0.0
    %708 = vmatprep.subr.mxu0 0.0
    %709 = vmatpush1.msra.mxu0 0.0
    %710 = vmatprep.subr.mxu0 0.0
    %711 = vmatpush1.msra.mxu0 0.0
    %712 = vmatprep.subr.mxu0 0.0
    %713 = vmatpush1.msra.mxu0 0.0
    %714 = vmatprep.subr.mxu0 0.0
    %715 = vmatpush1.msra.mxu0 0.0
    %716 = vmatprep.subr.mxu0 0.0
    %717 = vmatpush1.msra.mxu0 0.0
    %718 = vmatprep.subr.mxu0 0.0
    %719 = vmatpush1.msra.mxu0 0.0
    %720 = vmatprep.subr.mxu0 0.0
    %721 = vmatpush1.msra.mxu0 0.0
    %722 = vmatprep.subr.mxu0 0.0
    %723 = vmatpush1.msra.mxu0 0.0
    %724 = vmatprep.subr.mxu0 0.0
    %725 = vmatpush1.msra.mxu0 0.0
    %726 = vmatprep.subr.mxu0 0.0
    %727 = vmatpush1.msra.mxu0 0.0
    %728 = vmatprep.subr.mxu0 0.0
    %729 = vmatpush1.msra.mxu0 0.0
    %730 = vmatprep.subr.mxu0 0.0
    %731 = vmatpush1.msra.mxu0 0.0
    %732 = vmatprep.subr.mxu0 0.0
    %733 = vmatpush1.msra.mxu0 0.0
    %734 = vmatprep.subr.mxu0 0.0
    %735 = vmatpush1.msra.mxu0 0.0
    %736 = vmatprep.subr.mxu0 0.0
    %737 = vmatpush1.msra.mxu0 0.0
    %738 = vmatprep.mubr.f32.mxu0 0.0
    %v739 = vand.u32 %v591, 4294901760
    %740 = vmatmul.mubr.f32.gmra.mrb[0].mxu0 %v739
    %v741 = vpop.f32.mrb[0].mxu0
    %v742 = vadd.f32 %v666, %v741
    %v743 = vpop.f32.mrb[0].mxu0
    %744 = vdwg.mxu0
    %745 = vmatprep.subr.mxu0 0.0
    %v746 = vand.u32 %v589, 4294901760
    %v747 = vsub.f32 %v589, %v746
    %748 = vmatpush1.msra.mxu0 %v747
    %749 = vmatprep.subr.mxu0 0.0
    %750 = vmatpush1.msra.mxu0 0.0
    %751 = vmatprep.subr.mxu0 0.0
    %752 = vmatpush1.msra.mxu0 0.0
    %753 = vmatprep.subr.mxu0 0.0
    %754 = vmatpush1.msra.mxu0 0.0
    %755 = vmatprep.subr.mxu0 0.0
    %756 = vmatpush1.msra.mxu0 0.0
    %757 = vmatprep.subr.mxu0 0.0
    %758 = vmatpush1.msra.mxu0 0.0
    %759 = vmatprep.subr.mxu0 0.0
    %760 = vmatpush1.msra.mxu0 0.0
    %761 = vmatprep.subr.mxu0 0.0
    %762 = vmatpush1.msra.mxu0 0.0
    %763 = vmatprep.subr.mxu0 0.0
    %764 = vmatpush1.msra.mxu0 0.0
    %765 = vmatprep.subr.mxu0 0.0
    %766 = vmatpush1.msra.mxu0 0.0
    %767 = vmatprep.subr.mxu0 0.0
    %768 = vmatpush1.msra.mxu0 0.0
    %769 = vmatprep.subr.mxu0 0.0
    %770 = vmatpush1.msra.mxu0 0.0
    %771 = vmatprep.subr.mxu0 0.0
    %772 = vmatpush1.msra.mxu0 0.0
    %773 = vmatprep.subr.mxu0 0.0
    %774 = vmatpush1.msra.mxu0 0.0
    %775 = vmatprep.subr.mxu0 0.0
    %776 = vmatpush1.msra.mxu0 0.0
    %777 = vmatprep.subr.mxu0 0.0
    %778 = vmatpush1.msra.mxu0 0.0
    %779 = vmatprep.subr.mxu0 0.0
    %780 = vmatpush1.msra.mxu0 0.0
    %781 = vmatprep.subr.mxu0 0.0
    %782 = vmatpush1.msra.mxu0 0.0
    %783 = vmatprep.subr.mxu0 0.0
    %784 = vmatpush1.msra.mxu0 0.0
    %785 = vmatprep.subr.mxu0 0.0
    %786 = vmatpush1.msra.mxu0 0.0
    %787 = vmatprep.subr.mxu0 0.0
    %788 = vmatpush1.msra.mxu0 0.0
    %789 = vmatprep.subr.mxu0 0.0
    %790 = vmatpush1.msra.mxu0 0.0
    %791 = vmatprep.subr.mxu0 0.0
    %792 = vmatpush1.msra.mxu0 0.0
    %793 = vmatprep.subr.mxu0 0.0
    %794 = vmatpush1.msra.mxu0 0.0
    %795 = vmatprep.subr.mxu0 0.0
    %796 = vmatpush1.msra.mxu0 0.0
    %797 = vmatprep.subr.mxu0 0.0
    %798 = vmatpush1.msra.mxu0 0.0
    %799 = vmatprep.subr.mxu0 0.0
    %800 = vmatpush1.msra.mxu0 0.0
    %801 = vmatprep.subr.mxu0 0.0
    %802 = vmatpush1.msra.mxu0 0.0
    %803 = vmatprep.subr.mxu0 0.0
    %804 = vmatpush1.msra.mxu0 0.0
    %805 = vmatprep.subr.mxu0 0.0
    %806 = vmatpush1.msra.mxu0 0.0
    %807 = vmatprep.subr.mxu0 0.0
    %808 = vmatpush1.msra.mxu0 0.0
    %809 = vmatprep.subr.mxu0 0.0
    %810 = vmatpush1.msra.mxu0 0.0
    %811 = vmatprep.mubr.f32.mxu0 0.0
    %v812 = vand.u32 %v591, 4294901760
    %v813 = vsub.f32 %v591, %v812
    %814 = vmatmul.mubr.f32.gmra.mrb[0].mxu0 %v813
    %v815 = vpop.f32.mrb[0].mxu0
    %v816 = vadd.f32 %v742, %v815
    %v817 = vpop.f32.mrb[0].mxu0
    %818 = vdwg.mxu0
    %819 = vmatprep.subr.mxu0 0.0
    %v820 = vand.u32 %v589, 4294901760
    %821 = vmatpush1.msra.mxu0 %v820
    %822 = vmatprep.subr.mxu0 0.0
    %823 = vmatpush1.msra.mxu0 0.0
    %824 = vmatprep.subr.mxu0 0.0
    %825 = vmatpush1.msra.mxu0 0.0
    %826 = vmatprep.subr.mxu0 0.0
    %827 = vmatpush1.msra.mxu0 0.0
    %828 = vmatprep.subr.mxu0 0.0
    %829 = vmatpush1.msra.mxu0 0.0
    %830 = vmatprep.subr.mxu0 0.0
    %831 = vmatpush1.msra.mxu0 0.0
    %832 = vmatprep.subr.mxu0 0.0
    %833 = vmatpush1.msra.mxu0 0.0
    %834 = vmatprep.subr.mxu0 0.0
    %835 = vmatpush1.msra.mxu0 0.0
    %836 = vmatprep.subr.mxu0 0.0
    %837 = vmatpush1.msra.mxu0 0.0
    %838 = vmatprep.subr.mxu0 0.0
    %839 = vmatpush1.msra.mxu0 0.0
    %840 = vmatprep.subr.mxu0 0.0
    %841 = vmatpush1.msra.mxu0 0.0
    %842 = vmatprep.subr.mxu0 0.0
    %843 = vmatpush1.msra.mxu0 0.0
    %844 = vmatprep.subr.mxu0 0.0
    %845 = vmatpush1.msra.mxu0 0.0
    %846 = vmatprep.subr.mxu0 0.0
    %847 = vmatpush1.msra.mxu0 0.0
    %848 = vmatprep.subr.mxu0 0.0
    %849 = vmatpush1.msra.mxu0 0.0
    %850 = vmatprep.subr.mxu0 0.0
    %851 = vmatpush1.msra.mxu0 0.0
    %852 = vmatprep.subr.mxu0 0.0
    %853 = vmatpush1.msra.mxu0 0.0
    %854 = vmatprep.subr.mxu0 0.0
    %855 = vmatpush1.msra.mxu0 0.0
    %856 = vmatprep.subr.mxu0 0.0
    %857 = vmatpush1.msra.mxu0 0.0
    %858 = vmatprep.subr.mxu0 0.0
    %859 = vmatpush1.msra.mxu0 0.0
    %860 = vmatprep.subr.mxu0 0.0
    %861 = vmatpush1.msra.mxu0 0.0
    %862 = vmatprep.subr.mxu0 0.0
    %863 = vmatpush1.msra.mxu0 0.0
    %864 = vmatprep.subr.mxu0 0.0
    %865 = vmatpush1.msra.mxu0 0.0
    %866 = vmatprep.subr.mxu0 0.0
    %867 = vmatpush1.msra.mxu0 0.0
    %868 = vmatprep.subr.mxu0 0.0
    %869 = vmatpush1.msra.mxu0 0.0
    %870 = vmatprep.subr.mxu0 0.0
    %871 = vmatpush1.msra.mxu0 0.0
    %872 = vmatprep.subr.mxu0 0.0
    %873 = vmatpush1.msra.mxu0 0.0
    %874 = vmatprep.subr.mxu0 0.0
    %875 = vmatpush1.msra.mxu0 0.0
    %876 = vmatprep.subr.mxu0 0.0
    %877 = vmatpush1.msra.mxu0 0.0
    %878 = vmatprep.subr.mxu0 0.0
    %879 = vmatpush1.msra.mxu0 0.0
    %880 = vmatprep.subr.mxu0 0.0
    %881 = vmatpush1.msra.mxu0 0.0
    %882 = vmatprep.subr.mxu0 0.0
    %883 = vmatpush1.msra.mxu0 0.0
    %884 = vmatprep.mubr.f32.mxu0 0.0
    %v885 = vand.u32 %v591, 4294901760
    %v886 = vsub.f32 %v591, %v885
    %v887 = vand.u32 %v886, 4294901760
    %888 = vmatmul.mubr.f32.gmra.mrb[0].mxu0 %v887
    %v889 = vpop.f32.mrb[0].mxu0
    %v890 = vadd.f32 %v816, %v889
    %v891 = vpop.f32.mrb[0].mxu0
    %892 = vdwg.mxu0
    %893 = vmatprep.subr.mxu0 0.0
    %v894 = vand.u32 %v589, 4294901760
    %v895 = vsub.f32 %v589, %v894
    %v896 = vand.u32 %v895, 4294901760
    %897 = vmatpush1.msra.mxu0 %v896
    %898 = vmatprep.subr.mxu0 0.0
    %899 = vmatpush1.msra.mxu0 0.0
    %900 = vmatprep.subr.mxu0 0.0
    %901 = vmatpush1.msra.mxu0 0.0
    %902 = vmatprep.subr.mxu0 0.0
    %903 = vmatpush1.msra.mxu0 0.0
    %904 = vmatprep.subr.mxu0 0.0
    %905 = vmatpush1.msra.mxu0 0.0
    %906 = vmatprep.subr.mxu0 0.0
    %907 = vmatpush1.msra.mxu0 0.0
    %908 = vmatprep.subr.mxu0 0.0
    %909 = vmatpush1.msra.mxu0 0.0
    %910 = vmatprep.subr.mxu0 0.0
    %911 = vmatpush1.msra.mxu0 0.0
    %912 = vmatprep.subr.mxu0 0.0
    %913 = vmatpush1.msra.mxu0 0.0
    %914 = vmatprep.subr.mxu0 0.0
    %915 = vmatpush1.msra.mxu0 0.0
    %916 = vmatprep.subr.mxu0 0.0
    %917 = vmatpush1.msra.mxu0 0.0
    %918 = vmatprep.subr.mxu0 0.0
    %919 = vmatpush1.msra.mxu0 0.0
    %920 = vmatprep.subr.mxu0 0.0
    %921 = vmatpush1.msra.mxu0 0.0
    %922 = vmatprep.subr.mxu0 0.0
    %923 = vmatpush1.msra.mxu0 0.0
    %924 = vmatprep.subr.mxu0 0.0
    %925 = vmatpush1.msra.mxu0 0.0
    %926 = vmatprep.subr.mxu0 0.0
    %927 = vmatpush1.msra.mxu0 0.0
    %928 = vmatprep.subr.mxu0 0.0
    %929 = vmatpush1.msra.mxu0 0.0
    %930 = vmatprep.subr.mxu0 0.0
    %931 = vmatpush1.msra.mxu0 0.0
    %932 = vmatprep.subr.mxu0 0.0
    %933 = vmatpush1.msra.mxu0 0.0
    %934 = vmatprep.subr.mxu0 0.0
    %935 = vmatpush1.msra.mxu0 0.0
    %936 = vmatprep.subr.mxu0 0.0
    %937 = vmatpush1.msra.mxu0 0.0
    %938 = vmatprep.subr.mxu0 0.0
    %939 = vmatpush1.msra.mxu0 0.0
    %940 = vmatprep.subr.mxu0 0.0
    %941 = vmatpush1.msra.mxu0 0.0
    %942 = vmatprep.subr.mxu0 0.0
    %943 = vmatpush1.msra.mxu0 0.0
    %944 = vmatprep.subr.mxu0 0.0
    %945 = vmatpush1.msra.mxu0 0.0
    %946 = vmatprep.subr.mxu0 0.0
    %947 = vmatpush1.msra.mxu0 0.0
    %948 = vmatprep.subr.mxu0 0.0
    %949 = vmatpush1.msra.mxu0 0.0
    %950 = vmatprep.subr.mxu0 0.0
    %951 = vmatpush1.msra.mxu0 0.0
    %952 = vmatprep.subr.mxu0 0.0
    %953 = vmatpush1.msra.mxu0 0.0
    %954 = vmatprep.subr.mxu0 0.0
    %955 = vmatpush1.msra.mxu0 0.0
    %956 = vmatprep.subr.mxu0 0.0
    %957 = vmatpush1.msra.mxu0 0.0
    %958 = vmatprep.subr.mxu0 0.0
    %959 = vmatpush1.msra.mxu0 0.0
    %960 = vmatprep.mubr.f32.mxu0 0.0
    %v961 = vand.u32 %v591, 4294901760
    %962 = vmatmul.mubr.f32.gmra.mrb[0].mxu0 %v961
    %v963 = vpop.f32.mrb[0].mxu0
    %v964 = vadd.f32 %v890, %v963
    %v965 = vpop.f32.mrb[0].mxu0
    %966 = vdwg.mxu0
    %967 = vmatprep.subr.mxu0 0.0
    %v968 = vand.u32 %v589, 4294901760
    %969 = vmatpush1.msra.mxu0 %v968
    %970 = vmatprep.subr.mxu0 0.0
    %971 = vmatpush1.msra.mxu0 0.0
    %972 = vmatprep.subr.mxu0 0.0
    %973 = vmatpush1.msra.mxu0 0.0
    %974 = vmatprep.subr.mxu0 0.0
    %975 = vmatpush1.msra.mxu0 0.0
    %976 = vmatprep.subr.mxu0 0.0
    %977 = vmatpush1.msra.mxu0 0.0
    %978 = vmatprep.subr.mxu0 0.0
    %979 = vmatpush1.msra.mxu0 0.0
    %980 = vmatprep.subr.mxu0 0.0
    %981 = vmatpush1.msra.mxu0 0.0
    %982 = vmatprep.subr.mxu0 0.0
    %983 = vmatpush1.msra.mxu0 0.0
    %984 = vmatprep.subr.mxu0 0.0
    %985 = vmatpush1.msra.mxu0 0.0
    %986 = vmatprep.subr.mxu0 0.0
    %987 = vmatpush1.msra.mxu0 0.0
    %988 = vmatprep.subr.mxu0 0.0
    %989 = vmatpush1.msra.mxu0 0.0
    %990 = vmatprep.subr.mxu0 0.0
    %991 = vmatpush1.msra.mxu0 0.0
    %992 = vmatprep.subr.mxu0 0.0
    %993 = vmatpush1.msra.mxu0 0.0
    %994 = vmatprep.subr.mxu0 0.0
    %995 = vmatpush1.msra.mxu0 0.0
    %996 = vmatprep.subr.mxu0 0.0
    %997 = vmatpush1.msra.mxu0 0.0
    %998 = vmatprep.subr.mxu0 0.0
    %999 = vmatpush1.msra.mxu0 0.0
    %1000 = vmatprep.subr.mxu0 0.0
    %1001 = vmatpush1.msra.mxu0 0.0
    %1002 = vmatprep.subr.mxu0 0.0
    %1003 = vmatpush1.msra.mxu0 0.0
    %1004 = vmatprep.subr.mxu0 0.0
    %1005 = vmatpush1.msra.mxu0 0.0
    %1006 = vmatprep.subr.mxu0 0.0
    %1007 = vmatpush1.msra.mxu0 0.0
    %1008 = vmatprep.subr.mxu0 0.0
    %1009 = vmatpush1.msra.mxu0 0.0
    %1010 = vmatprep.subr.mxu0 0.0
    %1011 = vmatpush1.msra.mxu0 0.0
    %1012 = vmatprep.subr.mxu0 0.0
    %1013 = vmatpush1.msra.mxu0 0.0
    %1014 = vmatprep.subr.mxu0 0.0
    %1015 = vmatpush1.msra.mxu0 0.0
    %1016 = vmatprep.subr.mxu0 0.0
    %1017 = vmatpush1.msra.mxu0 0.0
    %1018 = vmatprep.subr.mxu0 0.0
    %1019 = vmatpush1.msra.mxu0 0.0
    %1020 = vmatprep.subr.mxu0 0.0
    %1021 = vmatpush1.msra.mxu0 0.0
    %1022 = vmatprep.subr.mxu0 0.0
    %1023 = vmatpush1.msra.mxu0 0.0
    %1024 = vmatprep.subr.mxu0 0.0
    %1025 = vmatpush1.msra.mxu0 0.0
    %1026 = vmatprep.subr.mxu0 0.0
    %1027 = vmatpush1.msra.mxu0 0.0
    %1028 = vmatprep.subr.mxu0 0.0
    %1029 = vmatpush1.msra.mxu0 0.0
    %1030 = vmatprep.subr.mxu0 0.0
    %1031 = vmatpush1.msra.mxu0 0.0
    %1032 = vmatprep.mubr.f32.mxu0 0.0
    %v1033 = vand.u32 %v591, 4294901760
    %1034 = vmatmul.mubr.f32.gmra.mrb[0].mxu0 %v1033
    %v1035 = vpop.f32.mrb[0].mxu0
    %v1036 = vadd.f32 %v964, %v1035
    %v1037 = vpop.f32.mrb[0].mxu0
    %1038 = vdwg.mxu0
    %v1039 = vmul.f32 %v588, %v1036
    %v1041 = vsel %vm550, %v1039, 0
    %v1044 = vsel %vm550, %v23, 0
    %v1047 = vsel %vm550, %v24, 0
    %v1050 = vsel %vm550, %v25, 0
    %v1053 = vsel %vm550, %v26, 0
    %1055 = vmatprep.subr.mxu0 0.0
    %v1056 = vand.u32 %v1044, 4294901760
    %1057 = vmatpush1.xpose.msra.mxu0 %v1056
    %1058 = vmatprep.subr.mxu0 0.0
    %v1059 = vand.u32 %v1047, 4294901760
    %1060 = vmatpush1.xpose.msra.mxu0 %v1059
    %1061 = vmatprep.subr.mxu0 0.0
    %v1062 = vand.u32 %v1050, 4294901760
    %1063 = vmatpush1.xpose.msra.mxu0 %v1062
    %1064 = vmatprep.subr.mxu0 0.0
    %v1065 = vand.u32 %v1053, 4294901760
    %1066 = vmatpush1.xpose.msra.mxu0 %v1065
    %1067 = vmatprep.subr.mxu0 0.0
    %1068 = vmatpush1.xpose.msra.mxu0 0.0
    %1069 = vmatprep.subr.mxu0 0.0
    %1070 = vmatpush1.xpose.msra.mxu0 0.0
    %1071 = vmatprep.subr.mxu0 0.0
    %1072 = vmatpush1.xpose.msra.mxu0 0.0
    %1073 = vmatprep.subr.mxu0 0.0
    %1074 = vmatpush1.xpose.msra.mxu0 0.0
    %1075 = vmatprep.subr.mxu0 0.0
    %1076 = vmatpush1.xpose.msra.mxu0 0.0
    %1077 = vmatprep.subr.mxu0 0.0
    %1078 = vmatpush1.xpose.msra.mxu0 0.0
    %1079 = vmatprep.subr.mxu0 0.0
    %1080 = vmatpush1.xpose.msra.mxu0 0.0
    %1081 = vmatprep.subr.mxu0 0.0
    %1082 = vmatpush1.xpose.msra.mxu0 0.0
    %1083 = vmatprep.subr.mxu0 0.0
    %1084 = vmatpush1.xpose.msra.mxu0 0.0
    %1085 = vmatprep.subr.mxu0 0.0
    %1086 = vmatpush1.xpose.msra.mxu0 0.0
    %1087 = vmatprep.subr.mxu0 0.0
    %1088 = vmatpush1.xpose.msra.mxu0 0.0
    %1089 = vmatprep.subr.mxu0 0.0
    %1090 = vmatpush1.xpose.msra.mxu0 0.0
    %1091 = vmatprep.subr.mxu0 0.0
    %1092 = vmatpush1.xpose.msra.mxu0 0.0
    %1093 = vmatprep.subr.mxu0 0.0
    %1094 = vmatpush1.xpose.msra.mxu0 0.0
    %1095 = vmatprep.subr.mxu0 0.0
    %1096 = vmatpush1.xpose.msra.mxu0 0.0
    %1097 = vmatprep.subr.mxu0 0.0
    %1098 = vmatpush1.xpose.msra.mxu0 0.0
    %1099 = vmatprep.subr.mxu0 0.0
    %1100 = vmatpush1.xpose.msra.mxu0 0.0
    %1101 = vmatprep.subr.mxu0 0.0
    %1102 = vmatpush1.xpose.msra.mxu0 0.0
    %1103 = vmatprep.subr.mxu0 0.0
    %1104 = vmatpush1.xpose.msra.mxu0 0.0
    %1105 = vmatprep.subr.mxu0 0.0
    %1106 = vmatpush1.xpose.msra.mxu0 0.0
    %1107 = vmatprep.subr.mxu0 0.0
    %1108 = vmatpush1.xpose.msra.mxu0 0.0
    %1109 = vmatprep.subr.mxu0 0.0
    %1110 = vmatpush1.xpose.msra.mxu0 0.0
    %1111 = vmatprep.subr.mxu0 0.0
    %1112 = vmatpush1.xpose.msra.mxu0 0.0
    %1113 = vmatprep.subr.mxu0 0.0
    %1114 = vmatpush1.xpose.msra.mxu0 0.0
    %1115 = vmatprep.subr.mxu0 0.0
    %1116 = vmatpush1.xpose.msra.mxu0 0.0
    %1117 = vmatprep.subr.mxu0 0.0
    %1118 = vmatpush1.xpose.msra.mxu0 0.0
    %1119 = vmatprep.subr.mxu0 0.0
    %1120 = vmatpush1.xpose.msra.mxu0 0.0
    %1121 = vmatprep.subr.mxu0 0.0
    %1122 = vmatpush1.xpose.msra.mxu0 0.0
    %1123 = vmatprep.mubr.f32.mxu0 0.0
    %v1124 = vand.u32 %v1041, 4294901760
    %v1125 = vsub.f32 %v1041, %v1124
    %v1126 = vand.u32 %v1125, 4294901760
    %v1127 = vsub.f32 %v1125, %v1126
    %v1128 = vand.u32 %v1127, 4294901760
    %1129 = vmatmul.mubr.f32.gmra.mrb[0].mxu0 %v1128
    %v1130 = vpop.f32.mrb[0].mxu0
    %v1131 = vadd.f32 0.0, %v1130
    %v1132 = vpop.f32.mrb[0].mxu0
    %1133 = vdwg.mxu0
    %1134 = vmatprep.subr.mxu0 0.0
    %v1135 = vand.u32 %v1044, 4294901760
    %v1136 = vsub.f32 %v1044, %v1135
    %v1137 = vand.u32 %v1136, 4294901760
    %v1138 = vsub.f32 %v1136, %v1137
    %v1139 = vand.u32 %v1138, 4294901760
    %1140 = vmatpush1.xpose.msra.mxu0 %v1139
    %1141 = vmatprep.subr.mxu0 0.0
    %v1142 = vand.u32 %v1047, 4294901760
    %v1143 = vsub.f32 %v1047, %v1142
    %v1144 = vand.u32 %v1143, 4294901760
    %v1145 = vsub.f32 %v1143, %v1144
    %v1146 = vand.u32 %v1145, 4294901760
    %1147 = vmatpush1.xpose.msra.mxu0 %v1146
    %1148 = vmatprep.subr.mxu0 0.0
    %v1149 = vand.u32 %v1050, 4294901760
    %v1150 = vsub.f32 %v1050, %v1149
    %v1151 = vand.u32 %v1150, 4294901760
    %v1152 = vsub.f32 %v1150, %v1151
    %v1153 = vand.u32 %v1152, 4294901760
    %1154 = vmatpush1.xpose.msra.mxu0 %v1153
    %1155 = vmatprep.subr.mxu0 0.0
    %v1156 = vand.u32 %v1053, 4294901760
    %v1157 = vsub.f32 %v1053, %v1156
    %v1158 = vand.u32 %v1157, 4294901760
    %v1159 = vsub.f32 %v1157, %v1158
    %v1160 = vand.u32 %v1159, 4294901760
    %1161 = vmatpush1.xpose.msra.mxu0 %v1160
    %1162 = vmatprep.subr.mxu0 0.0
    %1163 = vmatpush1.xpose.msra.mxu0 0.0
    %1164 = vmatprep.subr.mxu0 0.0
    %1165 = vmatpush1.xpose.msra.mxu0 0.0
    %1166 = vmatprep.subr.mxu0 0.0
    %1167 = vmatpush1.xpose.msra.mxu0 0.0
    %1168 = vmatprep.subr.mxu0 0.0
    %1169 = vmatpush1.xpose.msra.mxu0 0.0
    %1170 = vmatprep.subr.mxu0 0.0
    %1171 = vmatpush1.xpose.msra.mxu0 0.0
    %1172 = vmatprep.subr.mxu0 0.0
    %1173 = vmatpush1.xpose.msra.mxu0 0.0
    %1174 = vmatprep.subr.mxu0 0.0
    %1175 = vmatpush1.xpose.msra.mxu0 0.0
    %1176 = vmatprep.subr.mxu0 0.0
    %1177 = vmatpush1.xpose.msra.mxu0 0.0
    %1178 = vmatprep.subr.mxu0 0.0
    %1179 = vmatpush1.xpose.msra.mxu0 0.0
    %1180 = vmatprep.subr.mxu0 0.0
    %1181 = vmatpush1.xpose.msra.mxu0 0.0
    %1182 = vmatprep.subr.mxu0 0.0
    %1183 = vmatpush1.xpose.msra.mxu0 0.0
    %1184 = vmatprep.subr.mxu0 0.0
    %1185 = vmatpush1.xpose.msra.mxu0 0.0
    %1186 = vmatprep.subr.mxu0 0.0
    %1187 = vmatpush1.xpose.msra.mxu0 0.0
    %1188 = vmatprep.subr.mxu0 0.0
    %1189 = vmatpush1.xpose.msra.mxu0 0.0
    %1190 = vmatprep.subr.mxu0 0.0
    %1191 = vmatpush1.xpose.msra.mxu0 0.0
    %1192 = vmatprep.subr.mxu0 0.0
    %1193 = vmatpush1.xpose.msra.mxu0 0.0
    %1194 = vmatprep.subr.mxu0 0.0
    %1195 = vmatpush1.xpose.msra.mxu0 0.0
    %1196 = vmatprep.subr.mxu0 0.0
    %1197 = vmatpush1.xpose.msra.mxu0 0.0
    %1198 = vmatprep.subr.mxu0 0.0
    %1199 = vmatpush1.xpose.msra.mxu0 0.0
    %1200 = vmatprep.subr.mxu0 0.0
    %1201 = vmatpush1.xpose.msra.mxu0 0.0
    %1202 = vmatprep.subr.mxu0 0.0
    %1203 = vmatpush1.xpose.msra.mxu0 0.0
    %1204 = vmatprep.subr.mxu0 0.0
    %1205 = vmatpush1.xpose.msra.mxu0 0.0
    %1206 = vmatprep.subr.mxu0 0.0
    %1207 = vmatpush1.xpose.msra.mxu0 0.0
    %1208 = vmatprep.subr.mxu0 0.0
    %1209 = vmatpush1.xpose.msra.mxu0 0.0
    %1210 = vmatprep.subr.mxu0 0.0
    %1211 = vmatpush1.xpose.msra.mxu0 0.0
    %1212 = vmatprep.subr.mxu0 0.0
    %1213 = vmatpush1.xpose.msra.mxu0 0.0
    %1214 = vmatprep.subr.mxu0 0.0
    %1215 = vmatpush1.xpose.msra.mxu0 0.0
    %1216 = vmatprep.subr.mxu0 0.0
    %1217 = vmatpush1.xpose.msra.mxu0 0.0
    %1218 = vmatprep.mubr.f32.mxu0 0.0
    %v1219 = vand.u32 %v1041, 4294901760
    %1220 = vmatmul.mubr.f32.gmra.mrb[0].mxu0 %v1219
    %v1221 = vpop.f32.mrb[0].mxu0
    %v1222 = vadd.f32 %v1131, %v1221
    %v1223 = vpop.f32.mrb[0].mxu0
    %1224 = vdwg.mxu0
    %1225 = vmatprep.subr.mxu0 0.0
    %v1226 = vand.u32 %v1044, 4294901760
    %v1227 = vsub.f32 %v1044, %v1226
    %1228 = vmatpush1.xpose.msra.mxu0 %v1227
    %1229 = vmatprep.subr.mxu0 0.0
    %v1230 = vand.u32 %v1047, 4294901760
    %v1231 = vsub.f32 %v1047, %v1230
    %1232 = vmatpush1.xpose.msra.mxu0 %v1231
    %1233 = vmatprep.subr.mxu0 0.0
    %v1234 = vand.u32 %v1050, 4294901760
    %v1235 = vsub.f32 %v1050, %v1234
    %1236 = vmatpush1.xpose.msra.mxu0 %v1235
    %1237 = vmatprep.subr.mxu0 0.0
    %v1238 = vand.u32 %v1053, 4294901760
    %v1239 = vsub.f32 %v1053, %v1238
    %1240 = vmatpush1.xpose.msra.mxu0 %v1239
    %1241 = vmatprep.subr.mxu0 0.0
    %1242 = vmatpush1.xpose.msra.mxu0 0.0
    %1243 = vmatprep.subr.mxu0 0.0
    %1244 = vmatpush1.xpose.msra.mxu0 0.0
    %1245 = vmatprep.subr.mxu0 0.0
    %1246 = vmatpush1.xpose.msra.mxu0 0.0
    %1247 = vmatprep.subr.mxu0 0.0
    %1248 = vmatpush1.xpose.msra.mxu0 0.0
    %1249 = vmatprep.subr.mxu0 0.0
    %1250 = vmatpush1.xpose.msra.mxu0 0.0
    %1251 = vmatprep.subr.mxu0 0.0
    %1252 = vmatpush1.xpose.msra.mxu0 0.0
    %1253 = vmatprep.subr.mxu0 0.0
    %1254 = vmatpush1.xpose.msra.mxu0 0.0
    %1255 = vmatprep.subr.mxu0 0.0
    %1256 = vmatpush1.xpose.msra.mxu0 0.0
    %1257 = vmatprep.subr.mxu0 0.0
    %1258 = vmatpush1.xpose.msra.mxu0 0.0
    %1259 = vmatprep.subr.mxu0 0.0
    %1260 = vmatpush1.xpose.msra.mxu0 0.0
    %1261 = vmatprep.subr.mxu0 0.0
    %1262 = vmatpush1.xpose.msra.mxu0 0.0
    %1263 = vmatprep.subr.mxu0 0.0
    %1264 = vmatpush1.xpose.msra.mxu0 0.0
    %1265 = vmatprep.subr.mxu0 0.0
    %1266 = vmatpush1.xpose.msra.mxu0 0.0
    %1267 = vmatprep.subr.mxu0 0.0
    %1268 = vmatpush1.xpose.msra.mxu0 0.0
    %1269 = vmatprep.subr.mxu0 0.0
    %1270 = vmatpush1.xpose.msra.mxu0 0.0
    %1271 = vmatprep.subr.mxu0 0.0
    %1272 = vmatpush1.xpose.msra.mxu0 0.0
    %1273 = vmatprep.subr.mxu0 0.0
    %1274 = vmatpush1.xpose.msra.mxu0 0.0
    %1275 = vmatprep.subr.mxu0 0.0
    %1276 = vmatpush1.xpose.msra.mxu0 0.0
    %1277 = vmatprep.subr.mxu0 0.0
    %1278 = vmatpush1.xpose.msra.mxu0 0.0
    %1279 = vmatprep.subr.mxu0 0.0
    %1280 = vmatpush1.xpose.msra.mxu0 0.0
    %1281 = vmatprep.subr.mxu0 0.0
    %1282 = vmatpush1.xpose.msra.mxu0 0.0
    %1283 = vmatprep.subr.mxu0 0.0
    %1284 = vmatpush1.xpose.msra.mxu0 0.0
    %1285 = vmatprep.subr.mxu0 0.0
    %1286 = vmatpush1.xpose.msra.mxu0 0.0
    %1287 = vmatprep.subr.mxu0 0.0
    %1288 = vmatpush1.xpose.msra.mxu0 0.0
    %1289 = vmatprep.subr.mxu0 0.0
    %1290 = vmatpush1.xpose.msra.mxu0 0.0
    %1291 = vmatprep.subr.mxu0 0.0
    %1292 = vmatpush1.xpose.msra.mxu0 0.0
    %1293 = vmatprep.subr.mxu0 0.0
    %1294 = vmatpush1.xpose.msra.mxu0 0.0
    %1295 = vmatprep.subr.mxu0 0.0
    %1296 = vmatpush1.xpose.msra.mxu0 0.0
    %1297 = vmatprep.mubr.f32.mxu0 0.0
    %v1298 = vand.u32 %v1041, 4294901760
    %v1299 = vsub.f32 %v1041, %v1298
    %1300 = vmatmul.mubr.f32.gmra.mrb[0].mxu0 %v1299
    %v1301 = vpop.f32.mrb[0].mxu0
    %v1302 = vadd.f32 %v1222, %v1301
    %v1303 = vpop.f32.mrb[0].mxu0
    %1304 = vdwg.mxu0
    %1305 = vmatprep.subr.mxu0 0.0
    %v1306 = vand.u32 %v1044, 4294901760
    %1307 = vmatpush1.xpose.msra.mxu0 %v1306
    %1308 = vmatprep.subr.mxu0 0.0
    %v1309 = vand.u32 %v1047, 4294901760
    %1310 = vmatpush1.xpose.msra.mxu0 %v1309
    %1311 = vmatprep.subr.mxu0 0.0
    %v1312 = vand.u32 %v1050, 4294901760
    %1313 = vmatpush1.xpose.msra.mxu0 %v1312
    %1314 = vmatprep.subr.mxu0 0.0
    %v1315 = vand.u32 %v1053, 4294901760
    %1316 = vmatpush1.xpose.msra.mxu0 %v1315
    %1317 = vmatprep.subr.mxu0 0.0
    %1318 = vmatpush1.xpose.msra.mxu0 0.0
    %1319 = vmatprep.subr.mxu0 0.0
    %1320 = vmatpush1.xpose.msra.mxu0 0.0
    %1321 = vmatprep.subr.mxu0 0.0
    %1322 = vmatpush1.xpose.msra.mxu0 0.0
    %1323 = vmatprep.subr.mxu0 0.0
    %1324 = vmatpush1.xpose.msra.mxu0 0.0
    %1325 = vmatprep.subr.mxu0 0.0
    %1326 = vmatpush1.xpose.msra.mxu0 0.0
    %1327 = vmatprep.subr.mxu0 0.0
    %1328 = vmatpush1.xpose.msra.mxu0 0.0
    %1329 = vmatprep.subr.mxu0 0.0
    %1330 = vmatpush1.xpose.msra.mxu0 0.0
    %1331 = vmatprep.subr.mxu0 0.0
    %1332 = vmatpush1.xpose.msra.mxu0 0.0
    %1333 = vmatprep.subr.mxu0 0.0
    %1334 = vmatpush1.xpose.msra.mxu0 0.0
    %1335 = vmatprep.subr.mxu0 0.0
    %1336 = vmatpush1.xpose.msra.mxu0 0.0
    %1337 = vmatprep.subr.mxu0 0.0
    %1338 = vmatpush1.xpose.msra.mxu0 0.0
    %1339 = vmatprep.subr.mxu0 0.0
    %1340 = vmatpush1.xpose.msra.mxu0 0.0
    %1341 = vmatprep.subr.mxu0 0.0
    %1342 = vmatpush1.xpose.msra.mxu0 0.0
    %1343 = vmatprep.subr.mxu0 0.0
    %1344 = vmatpush1.xpose.msra.mxu0 0.0
    %1345 = vmatprep.subr.mxu0 0.0
    %1346 = vmatpush1.xpose.msra.mxu0 0.0
    %1347 = vmatprep.subr.mxu0 0.0
    %1348 = vmatpush1.xpose.msra.mxu0 0.0
    %1349 = vmatprep.subr.mxu0 0.0
    %1350 = vmatpush1.xpose.msra.mxu0 0.0
    %1351 = vmatprep.subr.mxu0 0.0
    %1352 = vmatpush1.xpose.msra.mxu0 0.0
    %1353 = vmatprep.subr.mxu0 0.0
    %1354 = vmatpush1.xpose.msra.mxu0 0.0
    %1355 = vmatprep.subr.mxu0 0.0
    %1356 = vmatpush1.xpose.msra.mxu0 0.0
    %1357 = vmatprep.subr.mxu0 0.0
    %1358 = vmatpush1.xpose.msra.mxu0 0.0
    %1359 = vmatprep.subr.mxu0 0.0
    %1360 = vmatpush1.xpose.msra.mxu0 0.0
    %1361 = vmatprep.subr.mxu0 0.0
    %1362 = vmatpush1.xpose.msra.mxu0 0.0
    %1363 = vmatprep.subr.mxu0 0.0
    %1364 = vmatpush1.xpose.msra.mxu0 0.0
    %1365 = vmatprep.subr.mxu0 0.0
    %1366 = vmatpush1.xpose.msra.mxu0 0.0
    %1367 = vmatprep.subr.mxu0 0.0
    %1368 = vmatpush1.xpose.msra.mxu0 0.0
    %1369 = vmatprep.subr.mxu0 0.0
    %1370 = vmatpush1.xpose.msra.mxu0 0.0
    %1371 = vmatprep.subr.mxu0 0.0
    %1372 = vmatpush1.xpose.msra.mxu0 0.0
    %1373 = vmatprep.mubr.f32.mxu0 0.0
    %v1374 = vand.u32 %v1041, 4294901760
    %v1375 = vsub.f32 %v1041, %v1374
    %v1376 = vand.u32 %v1375, 4294901760
    %1377 = vmatmul.mubr.f32.gmra.mrb[0].mxu0 %v1376
    %v1378 = vpop.f32.mrb[0].mxu0
    %v1379 = vadd.f32 %v1302, %v1378
    %v1380 = vpop.f32.mrb[0].mxu0
    %1381 = vdwg.mxu0
    %1382 = vmatprep.subr.mxu0 0.0
    %v1383 = vand.u32 %v1044, 4294901760
    %v1384 = vsub.f32 %v1044, %v1383
    %v1385 = vand.u32 %v1384, 4294901760
    %1386 = vmatpush1.xpose.msra.mxu0 %v1385
    %1387 = vmatprep.subr.mxu0 0.0
    %v1388 = vand.u32 %v1047, 4294901760
    %v1389 = vsub.f32 %v1047, %v1388
    %v1390 = vand.u32 %v1389, 4294901760
    %1391 = vmatpush1.xpose.msra.mxu0 %v1390
    %1392 = vmatprep.subr.mxu0 0.0
    %v1393 = vand.u32 %v1050, 4294901760
    %v1394 = vsub.f32 %v1050, %v1393
    %v1395 = vand.u32 %v1394, 4294901760
    %1396 = vmatpush1.xpose.msra.mxu0 %v1395
    %1397 = vmatprep.subr.mxu0 0.0
    %v1398 = vand.u32 %v1053, 4294901760
    %v1399 = vsub.f32 %v1053, %v1398
    %v1400 = vand.u32 %v1399, 4294901760
    %1401 = vmatpush1.xpose.msra.mxu0 %v1400
    %1402 = vmatprep.subr.mxu0 0.0
    %1403 = vmatpush1.xpose.msra.mxu0 0.0
    %1404 = vmatprep.subr.mxu0 0.0
    %1405 = vmatpush1.xpose.msra.mxu0 0.0
    %1406 = vmatprep.subr.mxu0 0.0
    %1407 = vmatpush1.xpose.msra.mxu0 0.0
    %1408 = vmatprep.subr.mxu0 0.0
    %1409 = vmatpush1.xpose.msra.mxu0 0.0
    %1410 = vmatprep.subr.mxu0 0.0
    %1411 = vmatpush1.xpose.msra.mxu0 0.0
    %1412 = vmatprep.subr.mxu0 0.0
    %1413 = vmatpush1.xpose.msra.mxu0 0.0
    %1414 = vmatprep.subr.mxu0 0.0
    %1415 = vmatpush1.xpose.msra.mxu0 0.0
    %1416 = vmatprep.subr.mxu0 0.0
    %1417 = vmatpush1.xpose.msra.mxu0 0.0
    %1418 = vmatprep.subr.mxu0 0.0
    %1419 = vmatpush1.xpose.msra.mxu0 0.0
    %1420 = vmatprep.subr.mxu0 0.0
    %1421 = vmatpush1.xpose.msra.mxu0 0.0
    %1422 = vmatprep.subr.mxu0 0.0
    %1423 = vmatpush1.xpose.msra.mxu0 0.0
    %1424 = vmatprep.subr.mxu0 0.0
    %1425 = vmatpush1.xpose.msra.mxu0 0.0
    %1426 = vmatprep.subr.mxu0 0.0
    %1427 = vmatpush1.xpose.msra.mxu0 0.0
    %1428 = vmatprep.subr.mxu0 0.0
    %1429 = vmatpush1.xpose.msra.mxu0 0.0
    %1430 = vmatprep.subr.mxu0 0.0
    %1431 = vmatpush1.xpose.msra.mxu0 0.0
    %1432 = vmatprep.subr.mxu0 0.0
    %1433 = vmatpush1.xpose.msra.mxu0 0.0
    %1434 = vmatprep.subr.mxu0 0.0
    %1435 = vmatpush1.xpose.msra.mxu0 0.0
    %1436 = vmatprep.subr.mxu0 0.0
    %1437 = vmatpush1.xpose.msra.mxu0 0.0
    %1438 = vmatprep.subr.mxu0 0.0
    %1439 = vmatpush1.xpose.msra.mxu0 0.0
    %1440 = vmatprep.subr.mxu0 0.0
    %1441 = vmatpush1.xpose.msra.mxu0 0.0
    %1442 = vmatprep.subr.mxu0 0.0
    %1443 = vmatpush1.xpose.msra.mxu0 0.0
    %1444 = vmatprep.subr.mxu0 0.0
    %1445 = vmatpush1.xpose.msra.mxu0 0.0
    %1446 = vmatprep.subr.mxu0 0.0
    %1447 = vmatpush1.xpose.msra.mxu0 0.0
    %1448 = vmatprep.subr.mxu0 0.0
    %1449 = vmatpush1.xpose.msra.mxu0 0.0
    %1450 = vmatprep.subr.mxu0 0.0
    %1451 = vmatpush1.xpose.msra.mxu0 0.0
    %1452 = vmatprep.subr.mxu0 0.0
    %1453 = vmatpush1.xpose.msra.mxu0 0.0
    %1454 = vmatprep.subr.mxu0 0.0
    %1455 = vmatpush1.xpose.msra.mxu0 0.0
    %1456 = vmatprep.subr.mxu0 0.0
    %1457 = vmatpush1.xpose.msra.mxu0 0.0
    %1458 = vmatprep.mubr.f32.mxu0 0.0
    %v1459 = vand.u32 %v1041, 4294901760
    %1460 = vmatmul.mubr.f32.gmra.mrb[0].mxu0 %v1459
    %v1461 = vpop.f32.mrb[0].mxu0
    %v1462 = vadd.f32 %v1379, %v1461
    %v1463 = vpop.f32.mrb[0].mxu0
    %1464 = vdwg.mxu0
    %1465 = vmatprep.subr.mxu0 0.0
    %v1466 = vand.u32 %v1044, 4294901760
    %1467 = vmatpush1.xpose.msra.mxu0 %v1466
    %1468 = vmatprep.subr.mxu0 0.0
    %v1469 = vand.u32 %v1047, 4294901760
    %1470 = vmatpush1.xpose.msra.mxu0 %v1469
    %1471 = vmatprep.subr.mxu0 0.0
    %v1472 = vand.u32 %v1050, 4294901760
    %1473 = vmatpush1.xpose.msra.mxu0 %v1472
    %1474 = vmatprep.subr.mxu0 0.0
    %v1475 = vand.u32 %v1053, 4294901760
    %1476 = vmatpush1.xpose.msra.mxu0 %v1475
    %1477 = vmatprep.subr.mxu0 0.0
    %1478 = vmatpush1.xpose.msra.mxu0 0.0
    %1479 = vmatprep.subr.mxu0 0.0
    %1480 = vmatpush1.xpose.msra.mxu0 0.0
    %1481 = vmatprep.subr.mxu0 0.0
    %1482 = vmatpush1.xpose.msra.mxu0 0.0
    %1483 = vmatprep.subr.mxu0 0.0
    %1484 = vmatpush1.xpose.msra.mxu0 0.0
    %1485 = vmatprep.subr.mxu0 0.0
    %1486 = vmatpush1.xpose.msra.mxu0 0.0
    %1487 = vmatprep.subr.mxu0 0.0
    %1488 = vmatpush1.xpose.msra.mxu0 0.0
    %1489 = vmatprep.subr.mxu0 0.0
    %1490 = vmatpush1.xpose.msra.mxu0 0.0
    %1491 = vmatprep.subr.mxu0 0.0
    %1492 = vmatpush1.xpose.msra.mxu0 0.0
    %1493 = vmatprep.subr.mxu0 0.0
    %1494 = vmatpush1.xpose.msra.mxu0 0.0
    %1495 = vmatprep.subr.mxu0 0.0
    %1496 = vmatpush1.xpose.msra.mxu0 0.0
    %1497 = vmatprep.subr.mxu0 0.0
    %1498 = vmatpush1.xpose.msra.mxu0 0.0
    %1499 = vmatprep.subr.mxu0 0.0
    %1500 = vmatpush1.xpose.msra.mxu0 0.0
    %1501 = vmatprep.subr.mxu0 0.0
    %1502 = vmatpush1.xpose.msra.mxu0 0.0
    %1503 = vmatprep.subr.mxu0 0.0
    %1504 = vmatpush1.xpose.msra.mxu0 0.0
    %1505 = vmatprep.subr.mxu0 0.0
    %1506 = vmatpush1.xpose.msra.mxu0 0.0
    %1507 = vmatprep.subr.mxu0 0.0
    %1508 = vmatpush1.xpose.msra.mxu0 0.0
    %1509 = vmatprep.subr.mxu0 0.0
    %1510 = vmatpush1.xpose.msra.mxu0 0.0
    %1511 = vmatprep.subr.mxu0 0.0
    %1512 = vmatpush1.xpose.msra.mxu0 0.0
    %1513 = vmatprep.subr.mxu0 0.0
    %1514 = vmatpush1.xpose.msra.mxu0 0.0
    %1515 = vmatprep.subr.mxu0 0.0
    %1516 = vmatpush1.xpose.msra.mxu0 0.0
    %1517 = vmatprep.subr.mxu0 0.0
    %1518 = vmatpush1.xpose.msra.mxu0 0.0
    %1519 = vmatprep.subr.mxu0 0.0
    %1520 = vmatpush1.xpose.msra.mxu0 0.0
    %1521 = vmatprep.subr.mxu0 0.0
    %1522 = vmatpush1.xpose.msra.mxu0 0.0
    %1523 = vmatprep.subr.mxu0 0.0
    %1524 = vmatpush1.xpose.msra.mxu0 0.0
    %1525 = vmatprep.subr.mxu0 0.0
    %1526 = vmatpush1.xpose.msra.mxu0 0.0
    %1527 = vmatprep.subr.mxu0 0.0
    %1528 = vmatpush1.xpose.msra.mxu0 0.0
    %1529 = vmatprep.subr.mxu0 0.0
    %1530 = vmatpush1.xpose.msra.mxu0 0.0
    %1531 = vmatprep.subr.mxu0 0.0
    %1532 = vmatpush1.xpose.msra.mxu0 0.0
    %1533 = vmatprep.mubr.f32.mxu0 0.0
    %v1534 = vand.u32 %v1041, 4294901760
    %1535 = vmatmul.mubr.f32.gmra.mrb[0].mxu0 %v1534
    %v1536 = vpop.f32.mrb[0].mxu0
    %v1537 = vadd.f32 %v1462, %v1536
    %v1538 = vpop.f32.mrb[0].mxu0
    %1539 = vdwg.mxu0
    %v1540 = vmax.f32 %v1537, 0.0
    %v1541 = vmul.f32 %v588, %v1540
    %1542 = vmatprep.subr.mxu0 0.0
    %v1543 = vand.u32 %v1541, 4294901760
    %1544 = vmatpush1.msra.mxu0 %v1543
    %1545 = vmatprep.subr.mxu0 0.0
    %1546 = vmatpush1.msra.mxu0 0.0
    %1547 = vmatprep.subr.mxu0 0.0
    %1548 = vmatpush1.msra.mxu0 0.0
    %1549 = vmatprep.subr.mxu0 0.0
    %1550 = vmatpush1.msra.mxu0 0.0
    %1551 = vmatprep.subr.mxu0 0.0
    %1552 = vmatpush1.msra.mxu0 0.0
    %1553 = vmatprep.subr.mxu0 0.0
    %1554 = vmatpush1.msra.mxu0 0.0
    %1555 = vmatprep.subr.mxu0 0.0
    %1556 = vmatpush1.msra.mxu0 0.0
    %1557 = vmatprep.subr.mxu0 0.0
    %1558 = vmatpush1.msra.mxu0 0.0
    %1559 = vmatprep.subr.mxu0 0.0
    %1560 = vmatpush1.msra.mxu0 0.0
    %1561 = vmatprep.subr.mxu0 0.0
    %1562 = vmatpush1.msra.mxu0 0.0
    %1563 = vmatprep.subr.mxu0 0.0
    %1564 = vmatpush1.msra.mxu0 0.0
    %1565 = vmatprep.subr.mxu0 0.0
    %1566 = vmatpush1.msra.mxu0 0.0
    %1567 = vmatprep.subr.mxu0 0.0
    %1568 = vmatpush1.msra.mxu0 0.0
    %1569 = vmatprep.subr.mxu0 0.0
    %1570 = vmatpush1.msra.mxu0 0.0
    %1571 = vmatprep.subr.mxu0 0.0
    %1572 = vmatpush1.msra.mxu0 0.0
    %1573 = vmatprep.subr.mxu0 0.0
    %1574 = vmatpush1.msra.mxu0 0.0
    %1575 = vmatprep.subr.mxu0 0.0
    %1576 = vmatpush1.msra.mxu0 0.0
    %1577 = vmatprep.subr.mxu0 0.0
    %1578 = vmatpush1.msra.mxu0 0.0
    %1579 = vmatprep.subr.mxu0 0.0
    %1580 = vmatpush1.msra.mxu0 0.0
    %1581 = vmatprep.subr.mxu0 0.0
    %1582 = vmatpush1.msra.mxu0 0.0
    %1583 = vmatprep.subr.mxu0 0.0
    %1584 = vmatpush1.msra.mxu0 0.0
    %1585 = vmatprep.subr.mxu0 0.0
    %1586 = vmatpush1.msra.mxu0 0.0
    %1587 = vmatprep.subr.mxu0 0.0
    %1588 = vmatpush1.msra.mxu0 0.0
    %1589 = vmatprep.subr.mxu0 0.0
    %1590 = vmatpush1.msra.mxu0 0.0
    %1591 = vmatprep.subr.mxu0 0.0
    %1592 = vmatpush1.msra.mxu0 0.0
    %1593 = vmatprep.subr.mxu0 0.0
    %1594 = vmatpush1.msra.mxu0 0.0
    %1595 = vmatprep.subr.mxu0 0.0
    %1596 = vmatpush1.msra.mxu0 0.0
    %1597 = vmatprep.subr.mxu0 0.0
    %1598 = vmatpush1.msra.mxu0 0.0
    %1599 = vmatprep.subr.mxu0 0.0
    %1600 = vmatpush1.msra.mxu0 0.0
    %1601 = vmatprep.subr.mxu0 0.0
    %1602 = vmatpush1.msra.mxu0 0.0
    %1603 = vmatprep.subr.mxu0 0.0
    %1604 = vmatpush1.msra.mxu0 0.0
    %1605 = vmatprep.subr.mxu0 0.0
    %1606 = vmatpush1.msra.mxu0 0.0
    %1607 = vmatprep.mubr.f32.mxu0 0.0
    %v1608 = vand.u32 %v591, 4294901760
    %v1609 = vsub.f32 %v591, %v1608
    %v1610 = vand.u32 %v1609, 4294901760
    %v1611 = vsub.f32 %v1609, %v1610
    %v1612 = vand.u32 %v1611, 4294901760
    %1613 = vmatmul.mubr.f32.gmra.mrb[0].mxu0 %v1612
    %v1614 = vpop.f32.mrb[0].mxu0
    %v1615 = vadd.f32 %v1541, %v1614
    %v1616 = vpop.f32.mrb[0].mxu0
    %1617 = vdwg.mxu0
    %1618 = vmatprep.subr.mxu0 0.0
    %v1619 = vand.u32 %v1541, 4294901760
    %v1620 = vsub.f32 %v1541, %v1619
    %v1621 = vand.u32 %v1620, 4294901760
    %v1622 = vsub.f32 %v1620, %v1621
    %v1623 = vand.u32 %v1622, 4294901760
    %1624 = vmatpush1.msra.mxu0 %v1623
    %1625 = vmatprep.subr.mxu0 0.0
    %1626 = vmatpush1.msra.mxu0 0.0
    %1627 = vmatprep.subr.mxu0 0.0
    %1628 = vmatpush1.msra.mxu0 0.0
    %1629 = vmatprep.subr.mxu0 0.0
    %1630 = vmatpush1.msra.mxu0 0.0
    %1631 = vmatprep.subr.mxu0 0.0
    %1632 = vmatpush1.msra.mxu0 0.0
    %1633 = vmatprep.subr.mxu0 0.0
    %1634 = vmatpush1.msra.mxu0 0.0
    %1635 = vmatprep.subr.mxu0 0.0
    %1636 = vmatpush1.msra.mxu0 0.0
    %1637 = vmatprep.subr.mxu0 0.0
    %1638 = vmatpush1.msra.mxu0 0.0
    %1639 = vmatprep.subr.mxu0 0.0
    %1640 = vmatpush1.msra.mxu0 0.0
    %1641 = vmatprep.subr.mxu0 0.0
    %1642 = vmatpush1.msra.mxu0 0.0
    %1643 = vmatprep.subr.mxu0 0.0
    %1644 = vmatpush1.msra.mxu0 0.0
    %1645 = vmatprep.subr.mxu0 0.0
    %1646 = vmatpush1.msra.mxu0 0.0
    %1647 = vmatprep.subr.mxu0 0.0
    %1648 = vmatpush1.msra.mxu0 0.0
    %1649 = vmatprep.subr.mxu0 0.0
    %1650 = vmatpush1.msra.mxu0 0.0
    %1651 = vmatprep.subr.mxu0 0.0
    %1652 = vmatpush1.msra.mxu0 0.0
    %1653 = vmatprep.subr.mxu0 0.0
    %1654 = vmatpush1.msra.mxu0 0.0
    %1655 = vmatprep.subr.mxu0 0.0
    %1656 = vmatpush1.msra.mxu0 0.0
    %1657 = vmatprep.subr.mxu0 0.0
    %1658 = vmatpush1.msra.mxu0 0.0
    %1659 = vmatprep.subr.mxu0 0.0
    %1660 = vmatpush1.msra.mxu0 0.0
    %1661 = vmatprep.subr.mxu0 0.0
    %1662 = vmatpush1.msra.mxu0 0.0
    %1663 = vmatprep.subr.mxu0 0.0
    %1664 = vmatpush1.msra.mxu0 0.0
    %1665 = vmatprep.subr.mxu0 0.0
    %1666 = vmatpush1.msra.mxu0 0.0
    %1667 = vmatprep.subr.mxu0 0.0
    %1668 = vmatpush1.msra.mxu0 0.0
    %1669 = vmatprep.subr.mxu0 0.0
    %1670 = vmatpush1.msra.mxu0 0.0
    %1671 = vmatprep.subr.mxu0 0.0
    %1672 = vmatpush1.msra.mxu0 0.0
    %1673 = vmatprep.subr.mxu0 0.0
    %1674 = vmatpush1.msra.mxu0 0.0
    %1675 = vmatprep.subr.mxu0 0.0
    %1676 = vmatpush1.msra.mxu0 0.0
    %1677 = vmatprep.subr.mxu0 0.0
    %1678 = vmatpush1.msra.mxu0 0.0
    %1679 = vmatprep.subr.mxu0 0.0
    %1680 = vmatpush1.msra.mxu0 0.0
    %1681 = vmatprep.subr.mxu0 0.0
    %1682 = vmatpush1.msra.mxu0 0.0
    %1683 = vmatprep.subr.mxu0 0.0
    %1684 = vmatpush1.msra.mxu0 0.0
    %1685 = vmatprep.subr.mxu0 0.0
    %1686 = vmatpush1.msra.mxu0 0.0
    %1687 = vmatprep.mubr.f32.mxu0 0.0
    %v1688 = vand.u32 %v591, 4294901760
    %1689 = vmatmul.mubr.f32.gmra.mrb[0].mxu0 %v1688
    %v1690 = vpop.f32.mrb[0].mxu0
    %v1691 = vadd.f32 %v1615, %v1690
    %v1692 = vpop.f32.mrb[0].mxu0
    %1693 = vdwg.mxu0
    %1694 = vmatprep.subr.mxu0 0.0
    %v1695 = vand.u32 %v1541, 4294901760
    %v1696 = vsub.f32 %v1541, %v1695
    %1697 = vmatpush1.msra.mxu0 %v1696
    %1698 = vmatprep.subr.mxu0 0.0
    %1699 = vmatpush1.msra.mxu0 0.0
    %1700 = vmatprep.subr.mxu0 0.0
    %1701 = vmatpush1.msra.mxu0 0.0
    %1702 = vmatprep.subr.mxu0 0.0
    %1703 = vmatpush1.msra.mxu0 0.0
    %1704 = vmatprep.subr.mxu0 0.0
    %1705 = vmatpush1.msra.mxu0 0.0
    %1706 = vmatprep.subr.mxu0 0.0
    %1707 = vmatpush1.msra.mxu0 0.0
    %1708 = vmatprep.subr.mxu0 0.0
    %1709 = vmatpush1.msra.mxu0 0.0
    %1710 = vmatprep.subr.mxu0 0.0
    %1711 = vmatpush1.msra.mxu0 0.0
    %1712 = vmatprep.subr.mxu0 0.0
    %1713 = vmatpush1.msra.mxu0 0.0
    %1714 = vmatprep.subr.mxu0 0.0
    %1715 = vmatpush1.msra.mxu0 0.0
    %1716 = vmatprep.subr.mxu0 0.0
    %1717 = vmatpush1.msra.mxu0 0.0
    %1718 = vmatprep.subr.mxu0 0.0
    %1719 = vmatpush1.msra.mxu0 0.0
    %1720 = vmatprep.subr.mxu0 0.0
    %1721 = vmatpush1.msra.mxu0 0.0
    %1722 = vmatprep.subr.mxu0 0.0
    %1723 = vmatpush1.msra.mxu0 0.0
    %1724 = vmatprep.subr.mxu0 0.0
    %1725 = vmatpush1.msra.mxu0 0.0
    %1726 = vmatprep.subr.mxu0 0.0
    %1727 = vmatpush1.msra.mxu0 0.0
    %1728 = vmatprep.subr.mxu0 0.0
    %1729 = vmatpush1.msra.mxu0 0.0
    %1730 = vmatprep.subr.mxu0 0.0
    %1731 = vmatpush1.msra.mxu0 0.0
    %1732 = vmatprep.subr.mxu0 0.0
    %1733 = vmatpush1.msra.mxu0 0.0
    %1734 = vmatprep.subr.mxu0 0.0
    %1735 = vmatpush1.msra.mxu0 0.0
    %1736 = vmatprep.subr.mxu0 0.0
    %1737 = vmatpush1.msra.mxu0 0.0
    %1738 = vmatprep.subr.mxu0 0.0
    %1739 = vmatpush1.msra.mxu0 0.0
    %1740 = vmatprep.subr.mxu0 0.0
    %1741 = vmatpush1.msra.mxu0 0.0
    %1742 = vmatprep.subr.mxu0 0.0
    %1743 = vmatpush1.msra.mxu0 0.0
    %1744 = vmatprep.subr.mxu0 0.0
    %1745 = vmatpush1.msra.mxu0 0.0
    %1746 = vmatprep.subr.mxu0 0.0
    %1747 = vmatpush1.msra.mxu0 0.0
    %1748 = vmatprep.subr.mxu0 0.0
    %1749 = vmatpush1.msra.mxu0 0.0
    %1750 = vmatprep.subr.mxu0 0.0
    %1751 = vmatpush1.msra.mxu0 0.0
    %1752 = vmatprep.subr.mxu0 0.0
    %1753 = vmatpush1.msra.mxu0 0.0
    %1754 = vmatprep.subr.mxu0 0.0
    %1755 = vmatpush1.msra.mxu0 0.0
    %1756 = vmatprep.subr.mxu0 0.0
    %1757 = vmatpush1.msra.mxu0 0.0
    %1758 = vmatprep.subr.mxu0 0.0
    %1759 = vmatpush1.msra.mxu0 0.0
    %1760 = vmatprep.mubr.f32.mxu0 0.0
    %v1761 = vand.u32 %v591, 4294901760
    %v1762 = vsub.f32 %v591, %v1761
    %1763 = vmatmul.mubr.f32.gmra.mrb[0].mxu0 %v1762
    %v1764 = vpop.f32.mrb[0].mxu0
    %v1765 = vadd.f32 %v1691, %v1764
    %v1766 = vpop.f32.mrb[0].mxu0
    %1767 = vdwg.mxu0
    %1768 = vmatprep.subr.mxu0 0.0
    %v1769 = vand.u32 %v1541, 4294901760
    %1770 = vmatpush1.msra.mxu0 %v1769
    %1771 = vmatprep.subr.mxu0 0.0
    %1772 = vmatpush1.msra.mxu0 0.0
    %1773 = vmatprep.subr.mxu0 0.0
    %1774 = vmatpush1.msra.mxu0 0.0
    %1775 = vmatprep.subr.mxu0 0.0
    %1776 = vmatpush1.msra.mxu0 0.0
    %1777 = vmatprep.subr.mxu0 0.0
    %1778 = vmatpush1.msra.mxu0 0.0
    %1779 = vmatprep.subr.mxu0 0.0
    %1780 = vmatpush1.msra.mxu0 0.0
    %1781 = vmatprep.subr.mxu0 0.0
    %1782 = vmatpush1.msra.mxu0 0.0
    %1783 = vmatprep.subr.mxu0 0.0
    %1784 = vmatpush1.msra.mxu0 0.0
    %1785 = vmatprep.subr.mxu0 0.0
    %1786 = vmatpush1.msra.mxu0 0.0
    %1787 = vmatprep.subr.mxu0 0.0
    %1788 = vmatpush1.msra.mxu0 0.0
    %1789 = vmatprep.subr.mxu0 0.0
    %1790 = vmatpush1.msra.mxu0 0.0
    %1791 = vmatprep.subr.mxu0 0.0
    %1792 = vmatpush1.msra.mxu0 0.0
    %1793 = vmatprep.subr.mxu0 0.0
    %1794 = vmatpush1.msra.mxu0 0.0
    %1795 = vmatprep.subr.mxu0 0.0
    %1796 = vmatpush1.msra.mxu0 0.0
    %1797 = vmatprep.subr.mxu0 0.0
    %1798 = vmatpush1.msra.mxu0 0.0
    %1799 = vmatprep.subr.mxu0 0.0
    %1800 = vmatpush1.msra.mxu0 0.0
    %1801 = vmatprep.subr.mxu0 0.0
    %1802 = vmatpush1.msra.mxu0 0.0
    %1803 = vmatprep.subr.mxu0 0.0
    %1804 = vmatpush1.msra.mxu0 0.0
    %1805 = vmatprep.subr.mxu0 0.0
    %1806 = vmatpush1.msra.mxu0 0.0
    %1807 = vmatprep.subr.mxu0 0.0
    %1808 = vmatpush1.msra.mxu0 0.0
    %1809 = vmatprep.subr.mxu0 0.0
    %1810 = vmatpush1.msra.mxu0 0.0
    %1811 = vmatprep.subr.mxu0 0.0
    %1812 = vmatpush1.msra.mxu0 0.0
    %1813 = vmatprep.subr.mxu0 0.0
    %1814 = vmatpush1.msra.mxu0 0.0
    %1815 = vmatprep.subr.mxu0 0.0
    %1816 = vmatpush1.msra.mxu0 0.0
    %1817 = vmatprep.subr.mxu0 0.0
    %1818 = vmatpush1.msra.mxu0 0.0
    %1819 = vmatprep.subr.mxu0 0.0
    %1820 = vmatpush1.msra.mxu0 0.0
    %1821 = vmatprep.subr.mxu0 0.0
    %1822 = vmatpush1.msra.mxu0 0.0
    %1823 = vmatprep.subr.mxu0 0.0
    %1824 = vmatpush1.msra.mxu0 0.0
    %1825 = vmatprep.subr.mxu0 0.0
    %1826 = vmatpush1.msra.mxu0 0.0
    %1827 = vmatprep.subr.mxu0 0.0
    %1828 = vmatpush1.msra.mxu0 0.0
    %1829 = vmatprep.subr.mxu0 0.0
    %1830 = vmatpush1.msra.mxu0 0.0
    %1831 = vmatprep.subr.mxu0 0.0
    %1832 = vmatpush1.msra.mxu0 0.0
    %1833 = vmatprep.mubr.f32.mxu0 0.0
    %v1834 = vand.u32 %v591, 4294901760
    %v1835 = vsub.f32 %v591, %v1834
    %v1836 = vand.u32 %v1835, 4294901760
    %1837 = vmatmul.mubr.f32.gmra.mrb[0].mxu0 %v1836
    %v1838 = vpop.f32.mrb[0].mxu0
    %v1839 = vadd.f32 %v1765, %v1838
    %v1840 = vpop.f32.mrb[0].mxu0
    %1841 = vdwg.mxu0
    %1842 = vmatprep.subr.mxu0 0.0
    %v1843 = vand.u32 %v1541, 4294901760
    %v1844 = vsub.f32 %v1541, %v1843
    %v1845 = vand.u32 %v1844, 4294901760
    %1846 = vmatpush1.msra.mxu0 %v1845
    %1847 = vmatprep.subr.mxu0 0.0
    %1848 = vmatpush1.msra.mxu0 0.0
    %1849 = vmatprep.subr.mxu0 0.0
    %1850 = vmatpush1.msra.mxu0 0.0
    %1851 = vmatprep.subr.mxu0 0.0
    %1852 = vmatpush1.msra.mxu0 0.0
    %1853 = vmatprep.subr.mxu0 0.0
    %1854 = vmatpush1.msra.mxu0 0.0
    %1855 = vmatprep.subr.mxu0 0.0
    %1856 = vmatpush1.msra.mxu0 0.0
    %1857 = vmatprep.subr.mxu0 0.0
    %1858 = vmatpush1.msra.mxu0 0.0
    %1859 = vmatprep.subr.mxu0 0.0
    %1860 = vmatpush1.msra.mxu0 0.0
    %1861 = vmatprep.subr.mxu0 0.0
    %1862 = vmatpush1.msra.mxu0 0.0
    %1863 = vmatprep.subr.mxu0 0.0
    %1864 = vmatpush1.msra.mxu0 0.0
    %1865 = vmatprep.subr.mxu0 0.0
    %1866 = vmatpush1.msra.mxu0 0.0
    %1867 = vmatprep.subr.mxu0 0.0
    %1868 = vmatpush1.msra.mxu0 0.0
    %1869 = vmatprep.subr.mxu0 0.0
    %1870 = vmatpush1.msra.mxu0 0.0
    %1871 = vmatprep.subr.mxu0 0.0
    %1872 = vmatpush1.msra.mxu0 0.0
    %1873 = vmatprep.subr.mxu0 0.0
    %1874 = vmatpush1.msra.mxu0 0.0
    %1875 = vmatprep.subr.mxu0 0.0
    %1876 = vmatpush1.msra.mxu0 0.0
    %1877 = vmatprep.subr.mxu0 0.0
    %1878 = vmatpush1.msra.mxu0 0.0
    %1879 = vmatprep.subr.mxu0 0.0
    %1880 = vmatpush1.msra.mxu0 0.0
    %1881 = vmatprep.subr.mxu0 0.0
    %1882 = vmatpush1.msra.mxu0 0.0
    %1883 = vmatprep.subr.mxu0 0.0
    %1884 = vmatpush1.msra.mxu0 0.0
    %1885 = vmatprep.subr.mxu0 0.0
    %1886 = vmatpush1.msra.mxu0 0.0
    %1887 = vmatprep.subr.mxu0 0.0
    %1888 = vmatpush1.msra.mxu0 0.0
    %1889 = vmatprep.subr.mxu0 0.0
    %1890 = vmatpush1.msra.mxu0 0.0
    %1891 = vmatprep.subr.mxu0 0.0
    %1892 = vmatpush1.msra.mxu0 0.0
    %1893 = vmatprep.subr.mxu0 0.0
    %1894 = vmatpush1.msra.mxu0 0.0
    %1895 = vmatprep.subr.mxu0 0.0
    %1896 = vmatpush1.msra.mxu0 0.0
    %1897 = vmatprep.subr.mxu0 0.0
    %1898 = vmatpush1.msra.mxu0 0.0
    %1899 = vmatprep.subr.mxu0 0.0
    %1900 = vmatpush1.msra.mxu0 0.0
    %1901 = vmatprep.subr.mxu0 0.0
    %1902 = vmatpush1.msra.mxu0 0.0
    %1903 = vmatprep.subr.mxu0 0.0
    %1904 = vmatpush1.msra.mxu0 0.0
    %1905 = vmatprep.subr.mxu0 0.0
    %1906 = vmatpush1.msra.mxu0 0.0
    %1907 = vmatprep.subr.mxu0 0.0
    %1908 = vmatpush1.msra.mxu0 0.0
    %1909 = vmatprep.mubr.f32.mxu0 0.0
    %v1910 = vand.u32 %v591, 4294901760
    %1911 = vmatmul.mubr.f32.gmra.mrb[0].mxu0 %v1910
    %v1912 = vpop.f32.mrb[0].mxu0
    %v1913 = vadd.f32 %v1839, %v1912
    %v1914 = vpop.f32.mrb[0].mxu0
    %1915 = vdwg.mxu0
    %1916 = vmatprep.subr.mxu0 0.0
    %v1917 = vand.u32 %v1541, 4294901760
    %1918 = vmatpush1.msra.mxu0 %v1917
    %1919 = vmatprep.subr.mxu0 0.0
    %1920 = vmatpush1.msra.mxu0 0.0
    %1921 = vmatprep.subr.mxu0 0.0
    %1922 = vmatpush1.msra.mxu0 0.0
    %1923 = vmatprep.subr.mxu0 0.0
    %1924 = vmatpush1.msra.mxu0 0.0
    %1925 = vmatprep.subr.mxu0 0.0
    %1926 = vmatpush1.msra.mxu0 0.0
    %1927 = vmatprep.subr.mxu0 0.0
    %1928 = vmatpush1.msra.mxu0 0.0
    %1929 = vmatprep.subr.mxu0 0.0
    %1930 = vmatpush1.msra.mxu0 0.0
    %1931 = vmatprep.subr.mxu0 0.0
    %1932 = vmatpush1.msra.mxu0 0.0
    %1933 = vmatprep.subr.mxu0 0.0
    %1934 = vmatpush1.msra.mxu0 0.0
    %1935 = vmatprep.subr.mxu0 0.0
    %1936 = vmatpush1.msra.mxu0 0.0
    %1937 = vmatprep.subr.mxu0 0.0
    %1938 = vmatpush1.msra.mxu0 0.0
    %1939 = vmatprep.subr.mxu0 0.0
    %1940 = vmatpush1.msra.mxu0 0.0
    %1941 = vmatprep.subr.mxu0 0.0
    %1942 = vmatpush1.msra.mxu0 0.0
    %1943 = vmatprep.subr.mxu0 0.0
    %1944 = vmatpush1.msra.mxu0 0.0
    %1945 = vmatprep.subr.mxu0 0.0
    %1946 = vmatpush1.msra.mxu0 0.0
    %1947 = vmatprep.subr.mxu0 0.0
    %1948 = vmatpush1.msra.mxu0 0.0
    %1949 = vmatprep.subr.mxu0 0.0
    %1950 = vmatpush1.msra.mxu0 0.0
    %1951 = vmatprep.subr.mxu0 0.0
    %1952 = vmatpush1.msra.mxu0 0.0
    %1953 = vmatprep.subr.mxu0 0.0
    %1954 = vmatpush1.msra.mxu0 0.0
    %1955 = vmatprep.subr.mxu0 0.0
    %1956 = vmatpush1.msra.mxu0 0.0
    %1957 = vmatprep.subr.mxu0 0.0
    %1958 = vmatpush1.msra.mxu0 0.0
    %1959 = vmatprep.subr.mxu0 0.0
    %1960 = vmatpush1.msra.mxu0 0.0
    %1961 = vmatprep.subr.mxu0 0.0
    %1962 = vmatpush1.msra.mxu0 0.0
    %1963 = vmatprep.subr.mxu0 0.0
    %1964 = vmatpush1.msra.mxu0 0.0
    %1965 = vmatprep.subr.mxu0 0.0
    %1966 = vmatpush1.msra.mxu0 0.0
    %1967 = vmatprep.subr.mxu0 0.0
    %1968 = vmatpush1.msra.mxu0 0.0
    %1969 = vmatprep.subr.mxu0 0.0
    %1970 = vmatpush1.msra.mxu0 0.0
    %1971 = vmatprep.subr.mxu0 0.0
    %1972 = vmatpush1.msra.mxu0 0.0
    %1973 = vmatprep.subr.mxu0 0.0
    %1974 = vmatpush1.msra.mxu0 0.0
    %1975 = vmatprep.subr.mxu0 0.0
    %1976 = vmatpush1.msra.mxu0 0.0
    %1977 = vmatprep.subr.mxu0 0.0
    %1978 = vmatpush1.msra.mxu0 0.0
    %1979 = vmatprep.subr.mxu0 0.0
    %1980 = vmatpush1.msra.mxu0 0.0
    %1981 = vmatprep.mubr.f32.mxu0 0.0
    %v1982 = vand.u32 %v591, 4294901760
    %1983 = vmatmul.mubr.f32.gmra.mrb[0].mxu0 %v1982
    %v1984 = vpop.f32.mrb[0].mxu0
    %v1985 = vadd.f32 %v1913, %v1984
    %v1986 = vpop.f32.mrb[0].mxu0
    %1987 = vdwg.mxu0
    %v1988 = vmul.f32 %v588, %v1985
    %v1990 = vsel %vm550, %v1988, 0
    %v1993 = vsel %vm550, %v27, 0
    %v1996 = vsel %vm550, %v28, 0
    %v1999 = vsel %vm550, %v29, 0
    %v2002 = vsel %vm550, %v30, 0
    %2004 = vmatprep.subr.mxu0 0.0
    %v2005 = vand.u32 %v1993, 4294901760
    %2006 = vmatpush1.xpose.msra.mxu0 %v2005
    %2007 = vmatprep.subr.mxu0 0.0
    %v2008 = vand.u32 %v1996, 4294901760
    %2009 = vmatpush1.xpose.msra.mxu0 %v2008
    %2010 = vmatprep.subr.mxu0 0.0
    %v2011 = vand.u32 %v1999, 4294901760
    %2012 = vmatpush1.xpose.msra.mxu0 %v2011
    %2013 = vmatprep.subr.mxu0 0.0
    %v2014 = vand.u32 %v2002, 4294901760
    %2015 = vmatpush1.xpose.msra.mxu0 %v2014
    %2016 = vmatprep.subr.mxu0 0.0
    %2017 = vmatpush1.xpose.msra.mxu0 0.0
    %2018 = vmatprep.subr.mxu0 0.0
    %2019 = vmatpush1.xpose.msra.mxu0 0.0
    %2020 = vmatprep.subr.mxu0 0.0
    %2021 = vmatpush1.xpose.msra.mxu0 0.0
    %2022 = vmatprep.subr.mxu0 0.0
    %2023 = vmatpush1.xpose.msra.mxu0 0.0
    %2024 = vmatprep.subr.mxu0 0.0
    %2025 = vmatpush1.xpose.msra.mxu0 0.0
    %2026 = vmatprep.subr.mxu0 0.0
    %2027 = vmatpush1.xpose.msra.mxu0 0.0
    %2028 = vmatprep.subr.mxu0 0.0
    %2029 = vmatpush1.xpose.msra.mxu0 0.0
    %2030 = vmatprep.subr.mxu0 0.0
    %2031 = vmatpush1.xpose.msra.mxu0 0.0
    %2032 = vmatprep.subr.mxu0 0.0
    %2033 = vmatpush1.xpose.msra.mxu0 0.0
    %2034 = vmatprep.subr.mxu0 0.0
    %2035 = vmatpush1.xpose.msra.mxu0 0.0
    %2036 = vmatprep.subr.mxu0 0.0
    %2037 = vmatpush1.xpose.msra.mxu0 0.0
    %2038 = vmatprep.subr.mxu0 0.0
    %2039 = vmatpush1.xpose.msra.mxu0 0.0
    %2040 = vmatprep.subr.mxu0 0.0
    %2041 = vmatpush1.xpose.msra.mxu0 0.0
    %2042 = vmatprep.subr.mxu0 0.0
    %2043 = vmatpush1.xpose.msra.mxu0 0.0
    %2044 = vmatprep.subr.mxu0 0.0
    %2045 = vmatpush1.xpose.msra.mxu0 0.0
    %2046 = vmatprep.subr.mxu0 0.0
    %2047 = vmatpush1.xpose.msra.mxu0 0.0
    %2048 = vmatprep.subr.mxu0 0.0
    %2049 = vmatpush1.xpose.msra.mxu0 0.0
    %2050 = vmatprep.subr.mxu0 0.0
    %2051 = vmatpush1.xpose.msra.mxu0 0.0
    %2052 = vmatprep.subr.mxu0 0.0
    %2053 = vmatpush1.xpose.msra.mxu0 0.0
    %2054 = vmatprep.subr.mxu0 0.0
    %2055 = vmatpush1.xpose.msra.mxu0 0.0
    %2056 = vmatprep.subr.mxu0 0.0
    %2057 = vmatpush1.xpose.msra.mxu0 0.0
    %2058 = vmatprep.subr.mxu0 0.0
    %2059 = vmatpush1.xpose.msra.mxu0 0.0
    %2060 = vmatprep.subr.mxu0 0.0
    %2061 = vmatpush1.xpose.msra.mxu0 0.0
    %2062 = vmatprep.subr.mxu0 0.0
    %2063 = vmatpush1.xpose.msra.mxu0 0.0
    %2064 = vmatprep.subr.mxu0 0.0
    %2065 = vmatpush1.xpose.msra.mxu0 0.0
    %2066 = vmatprep.subr.mxu0 0.0
    %2067 = vmatpush1.xpose.msra.mxu0 0.0
    %2068 = vmatprep.subr.mxu0 0.0
    %2069 = vmatpush1.xpose.msra.mxu0 0.0
    %2070 = vmatprep.subr.mxu0 0.0
    %2071 = vmatpush1.xpose.msra.mxu0 0.0
    %2072 = vmatprep.mubr.f32.mxu0 0.0
    %v2073 = vand.u32 %v1990, 4294901760
    %v2074 = vsub.f32 %v1990, %v2073
    %v2075 = vand.u32 %v2074, 4294901760
    %v2076 = vsub.f32 %v2074, %v2075
    %v2077 = vand.u32 %v2076, 4294901760
    %2078 = vmatmul.mubr.f32.gmra.mrb[0].mxu0 %v2077
    %v2079 = vpop.f32.mrb[0].mxu0
    %v2080 = vadd.f32 0.0, %v2079
    %v2081 = vpop.f32.mrb[0].mxu0
    %2082 = vdwg.mxu0
    %2083 = vmatprep.subr.mxu0 0.0
    %v2084 = vand.u32 %v1993, 4294901760
    %v2085 = vsub.f32 %v1993, %v2084
    %v2086 = vand.u32 %v2085, 4294901760
    %v2087 = vsub.f32 %v2085, %v2086
    %v2088 = vand.u32 %v2087, 4294901760
    %2089 = vmatpush1.xpose.msra.mxu0 %v2088
    %2090 = vmatprep.subr.mxu0 0.0
    %v2091 = vand.u32 %v1996, 4294901760
    %v2092 = vsub.f32 %v1996, %v2091
    %v2093 = vand.u32 %v2092, 4294901760
    %v2094 = vsub.f32 %v2092, %v2093
    %v2095 = vand.u32 %v2094, 4294901760
    %2096 = vmatpush1.xpose.msra.mxu0 %v2095
    %2097 = vmatprep.subr.mxu0 0.0
    %v2098 = vand.u32 %v1999, 4294901760
    %v2099 = vsub.f32 %v1999, %v2098
    %v2100 = vand.u32 %v2099, 4294901760
    %v2101 = vsub.f32 %v2099, %v2100
    %v2102 = vand.u32 %v2101, 4294901760
    %2103 = vmatpush1.xpose.msra.mxu0 %v2102
    %2104 = vmatprep.subr.mxu0 0.0
    %v2105 = vand.u32 %v2002, 4294901760
    %v2106 = vsub.f32 %v2002, %v2105
    %v2107 = vand.u32 %v2106, 4294901760
    %v2108 = vsub.f32 %v2106, %v2107
    %v2109 = vand.u32 %v2108, 4294901760
    %2110 = vmatpush1.xpose.msra.mxu0 %v2109
    %2111 = vmatprep.subr.mxu0 0.0
    %2112 = vmatpush1.xpose.msra.mxu0 0.0
    %2113 = vmatprep.subr.mxu0 0.0
    %2114 = vmatpush1.xpose.msra.mxu0 0.0
    %2115 = vmatprep.subr.mxu0 0.0
    %2116 = vmatpush1.xpose.msra.mxu0 0.0
    %2117 = vmatprep.subr.mxu0 0.0
    %2118 = vmatpush1.xpose.msra.mxu0 0.0
    %2119 = vmatprep.subr.mxu0 0.0
    %2120 = vmatpush1.xpose.msra.mxu0 0.0
    %2121 = vmatprep.subr.mxu0 0.0
    %2122 = vmatpush1.xpose.msra.mxu0 0.0
    %2123 = vmatprep.subr.mxu0 0.0
    %2124 = vmatpush1.xpose.msra.mxu0 0.0
    %2125 = vmatprep.subr.mxu0 0.0
    %2126 = vmatpush1.xpose.msra.mxu0 0.0
    %2127 = vmatprep.subr.mxu0 0.0
    %2128 = vmatpush1.xpose.msra.mxu0 0.0
    %2129 = vmatprep.subr.mxu0 0.0
    %2130 = vmatpush1.xpose.msra.mxu0 0.0
    %2131 = vmatprep.subr.mxu0 0.0
    %2132 = vmatpush1.xpose.msra.mxu0 0.0
    %2133 = vmatprep.subr.mxu0 0.0
    %2134 = vmatpush1.xpose.msra.mxu0 0.0
    %2135 = vmatprep.subr.mxu0 0.0
    %2136 = vmatpush1.xpose.msra.mxu0 0.0
    %2137 = vmatprep.subr.mxu0 0.0
    %2138 = vmatpush1.xpose.msra.mxu0 0.0
    %2139 = vmatprep.subr.mxu0 0.0
    %2140 = vmatpush1.xpose.msra.mxu0 0.0
    %2141 = vmatprep.subr.mxu0 0.0
    %2142 = vmatpush1.xpose.msra.mxu0 0.0
    %2143 = vmatprep.subr.mxu0 0.0
    %2144 = vmatpush1.xpose.msra.mxu0 0.0
    %2145 = vmatprep.subr.mxu0 0.0
    %2146 = vmatpush1.xpose.msra.mxu0 0.0
    %2147 = vmatprep.subr.mxu0 0.0
    %2148 = vmatpush1.xpose.msra.mxu0 0.0
    %2149 = vmatprep.subr.mxu0 0.0
    %2150 = vmatpush1.xpose.msra.mxu0 0.0
    %2151 = vmatprep.subr.mxu0 0.0
    %2152 = vmatpush1.xpose.msra.mxu0 0.0
    %2153 = vmatprep.subr.mxu0 0.0
    %2154 = vmatpush1.xpose.msra.mxu0 0.0
    %2155 = vmatprep.subr.mxu0 0.0
    %2156 = vmatpush1.xpose.msra.mxu0 0.0
    %2157 = vmatprep.subr.mxu0 0.0
    %2158 = vmatpush1.xpose.msra.mxu0 0.0
    %2159 = vmatprep.subr.mxu0 0.0
    %2160 = vmatpush1.xpose.msra.mxu0 0.0
    %2161 = vmatprep.subr.mxu0 0.0
    %2162 = vmatpush1.xpose.msra.mxu0 0.0
    %2163 = vmatprep.subr.mxu0 0.0
    %2164 = vmatpush1.xpose.msra.mxu0 0.0
    %2165 = vmatprep.subr.mxu0 0.0
    %2166 = vmatpush1.xpose.msra.mxu0 0.0
    %2167 = vmatprep.mubr.f32.mxu0 0.0
    %v2168 = vand.u32 %v1990, 4294901760
    %2169 = vmatmul.mubr.f32.gmra.mrb[0].mxu0 %v2168
    %v2170 = vpop.f32.mrb[0].mxu0
    %v2171 = vadd.f32 %v2080, %v2170
    %v2172 = vpop.f32.mrb[0].mxu0
    %2173 = vdwg.mxu0
    %2174 = vmatprep.subr.mxu0 0.0
    %v2175 = vand.u32 %v1993, 4294901760
    %v2176 = vsub.f32 %v1993, %v2175
    %2177 = vmatpush1.xpose.msra.mxu0 %v2176
    %2178 = vmatprep.subr.mxu0 0.0
    %v2179 = vand.u32 %v1996, 4294901760
    %v2180 = vsub.f32 %v1996, %v2179
    %2181 = vmatpush1.xpose.msra.mxu0 %v2180
    %2182 = vmatprep.subr.mxu0 0.0
    %v2183 = vand.u32 %v1999, 4294901760
    %v2184 = vsub.f32 %v1999, %v2183
    %2185 = vmatpush1.xpose.msra.mxu0 %v2184
    %2186 = vmatprep.subr.mxu0 0.0
    %v2187 = vand.u32 %v2002, 4294901760
    %v2188 = vsub.f32 %v2002, %v2187
    %2189 = vmatpush1.xpose.msra.mxu0 %v2188
    %2190 = vmatprep.subr.mxu0 0.0
    %2191 = vmatpush1.xpose.msra.mxu0 0.0
    %2192 = vmatprep.subr.mxu0 0.0
    %2193 = vmatpush1.xpose.msra.mxu0 0.0
    %2194 = vmatprep.subr.mxu0 0.0
    %2195 = vmatpush1.xpose.msra.mxu0 0.0
    %2196 = vmatprep.subr.mxu0 0.0
    %2197 = vmatpush1.xpose.msra.mxu0 0.0
    %2198 = vmatprep.subr.mxu0 0.0
    %2199 = vmatpush1.xpose.msra.mxu0 0.0
    %2200 = vmatprep.subr.mxu0 0.0
    %2201 = vmatpush1.xpose.msra.mxu0 0.0
    %2202 = vmatprep.subr.mxu0 0.0
    %2203 = vmatpush1.xpose.msra.mxu0 0.0
    %2204 = vmatprep.subr.mxu0 0.0
    %2205 = vmatpush1.xpose.msra.mxu0 0.0
    %2206 = vmatprep.subr.mxu0 0.0
    %2207 = vmatpush1.xpose.msra.mxu0 0.0
    %2208 = vmatprep.subr.mxu0 0.0
    %2209 = vmatpush1.xpose.msra.mxu0 0.0
    %2210 = vmatprep.subr.mxu0 0.0
    %2211 = vmatpush1.xpose.msra.mxu0 0.0
    %2212 = vmatprep.subr.mxu0 0.0
    %2213 = vmatpush1.xpose.msra.mxu0 0.0
    %2214 = vmatprep.subr.mxu0 0.0
    %2215 = vmatpush1.xpose.msra.mxu0 0.0
    %2216 = vmatprep.subr.mxu0 0.0
    %2217 = vmatpush1.xpose.msra.mxu0 0.0
    %2218 = vmatprep.subr.mxu0 0.0
    %2219 = vmatpush1.xpose.msra.mxu0 0.0
    %2220 = vmatprep.subr.mxu0 0.0
    %2221 = vmatpush1.xpose.msra.mxu0 0.0
    %2222 = vmatprep.subr.mxu0 0.0
    %2223 = vmatpush1.xpose.msra.mxu0 0.0
    %2224 = vmatprep.subr.mxu0 0.0
    %2225 = vmatpush1.xpose.msra.mxu0 0.0
    %2226 = vmatprep.subr.mxu0 0.0
    %2227 = vmatpush1.xpose.msra.mxu0 0.0
    %2228 = vmatprep.subr.mxu0 0.0
    %2229 = vmatpush1.xpose.msra.mxu0 0.0
    %2230 = vmatprep.subr.mxu0 0.0
    %2231 = vmatpush1.xpose.msra.mxu0 0.0
    %2232 = vmatprep.subr.mxu0 0.0
    %2233 = vmatpush1.xpose.msra.mxu0 0.0
    %2234 = vmatprep.subr.mxu0 0.0
    %2235 = vmatpush1.xpose.msra.mxu0 0.0
    %2236 = vmatprep.subr.mxu0 0.0
    %2237 = vmatpush1.xpose.msra.mxu0 0.0
    %2238 = vmatprep.subr.mxu0 0.0
    %2239 = vmatpush1.xpose.msra.mxu0 0.0
    %2240 = vmatprep.subr.mxu0 0.0
    %2241 = vmatpush1.xpose.msra.mxu0 0.0
    %2242 = vmatprep.subr.mxu0 0.0
    %2243 = vmatpush1.xpose.msra.mxu0 0.0
    %2244 = vmatprep.subr.mxu0 0.0
    %2245 = vmatpush1.xpose.msra.mxu0 0.0
    %2246 = vmatprep.mubr.f32.mxu0 0.0
    %v2247 = vand.u32 %v1990, 4294901760
    %v2248 = vsub.f32 %v1990, %v2247
    %2249 = vmatmul.mubr.f32.gmra.mrb[0].mxu0 %v2248
    %v2250 = vpop.f32.mrb[0].mxu0
    %v2251 = vadd.f32 %v2171, %v2250
    %v2252 = vpop.f32.mrb[0].mxu0
    %2253 = vdwg.mxu0
    %2254 = vmatprep.subr.mxu0 0.0
    %v2255 = vand.u32 %v1993, 4294901760
    %2256 = vmatpush1.xpose.msra.mxu0 %v2255
    %2257 = vmatprep.subr.mxu0 0.0
    %v2258 = vand.u32 %v1996, 4294901760
    %2259 = vmatpush1.xpose.msra.mxu0 %v2258
    %2260 = vmatprep.subr.mxu0 0.0
    %v2261 = vand.u32 %v1999, 4294901760
    %2262 = vmatpush1.xpose.msra.mxu0 %v2261
    %2263 = vmatprep.subr.mxu0 0.0
    %v2264 = vand.u32 %v2002, 4294901760
    %2265 = vmatpush1.xpose.msra.mxu0 %v2264
    %2266 = vmatprep.subr.mxu0 0.0
    %2267 = vmatpush1.xpose.msra.mxu0 0.0
    %2268 = vmatprep.subr.mxu0 0.0
    %2269 = vmatpush1.xpose.msra.mxu0 0.0
    %2270 = vmatprep.subr.mxu0 0.0
    %2271 = vmatpush1.xpose.msra.mxu0 0.0
    %2272 = vmatprep.subr.mxu0 0.0
    %2273 = vmatpush1.xpose.msra.mxu0 0.0
    %2274 = vmatprep.subr.mxu0 0.0
    %2275 = vmatpush1.xpose.msra.mxu0 0.0
    %2276 = vmatprep.subr.mxu0 0.0
    %2277 = vmatpush1.xpose.msra.mxu0 0.0
    %2278 = vmatprep.subr.mxu0 0.0
    %2279 = vmatpush1.xpose.msra.mxu0 0.0
    %2280 = vmatprep.subr.mxu0 0.0
    %2281 = vmatpush1.xpose.msra.mxu0 0.0
    %2282 = vmatprep.subr.mxu0 0.0
    %2283 = vmatpush1.xpose.msra.mxu0 0.0
    %2284 = vmatprep.subr.mxu0 0.0
    %2285 = vmatpush1.xpose.msra.mxu0 0.0
    %2286 = vmatprep.subr.mxu0 0.0
    %2287 = vmatpush1.xpose.msra.mxu0 0.0
    %2288 = vmatprep.subr.mxu0 0.0
    %2289 = vmatpush1.xpose.msra.mxu0 0.0
    %2290 = vmatprep.subr.mxu0 0.0
    %2291 = vmatpush1.xpose.msra.mxu0 0.0
    %2292 = vmatprep.subr.mxu0 0.0
    %2293 = vmatpush1.xpose.msra.mxu0 0.0
    %2294 = vmatprep.subr.mxu0 0.0
    %2295 = vmatpush1.xpose.msra.mxu0 0.0
    %2296 = vmatprep.subr.mxu0 0.0
    %2297 = vmatpush1.xpose.msra.mxu0 0.0
    %2298 = vmatprep.subr.mxu0 0.0
    %2299 = vmatpush1.xpose.msra.mxu0 0.0
    %2300 = vmatprep.subr.mxu0 0.0
    %2301 = vmatpush1.xpose.msra.mxu0 0.0
    %2302 = vmatprep.subr.mxu0 0.0
    %2303 = vmatpush1.xpose.msra.mxu0 0.0
    %2304 = vmatprep.subr.mxu0 0.0
    %2305 = vmatpush1.xpose.msra.mxu0 0.0
    %2306 = vmatprep.subr.mxu0 0.0
    %2307 = vmatpush1.xpose.msra.mxu0 0.0
    %2308 = vmatprep.subr.mxu0 0.0
    %2309 = vmatpush1.xpose.msra.mxu0 0.0
    %2310 = vmatprep.subr.mxu0 0.0
    %2311 = vmatpush1.xpose.msra.mxu0 0.0
    %2312 = vmatprep.subr.mxu0 0.0
    %2313 = vmatpush1.xpose.msra.mxu0 0.0
    %2314 = vmatprep.subr.mxu0 0.0
    %2315 = vmatpush1.xpose.msra.mxu0 0.0
    %2316 = vmatprep.subr.mxu0 0.0
    %2317 = vmatpush1.xpose.msra.mxu0 0.0
    %2318 = vmatprep.subr.mxu0 0.0
    %2319 = vmatpush1.xpose.msra.mxu0 0.0
    %2320 = vmatprep.subr.mxu0 0.0
    %2321 = vmatpush1.xpose.msra.mxu0 0.0
    %2322 = vmatprep.mubr.f32.mxu0 0.0
    %v2323 = vand.u32 %v1990, 4294901760
    %v2324 = vsub.f32 %v1990, %v2323
    %v2325 = vand.u32 %v2324, 4294901760
    %2326 = vmatmul.mubr.f32.gmra.mrb[0].mxu0 %v2325
    %v2327 = vpop.f32.mrb[0].mxu0
    %v2328 = vadd.f32 %v2251, %v2327
    %v2329 = vpop.f32.mrb[0].mxu0
    %2330 = vdwg.mxu0
    %2331 = vmatprep.subr.mxu0 0.0
    %v2332 = vand.u32 %v1993, 4294901760
    %v2333 = vsub.f32 %v1993, %v2332
    %v2334 = vand.u32 %v2333, 4294901760
    %2335 = vmatpush1.xpose.msra.mxu0 %v2334
    %2336 = vmatprep.subr.mxu0 0.0
    %v2337 = vand.u32 %v1996, 4294901760
    %v2338 = vsub.f32 %v1996, %v2337
    %v2339 = vand.u32 %v2338, 4294901760
    %2340 = vmatpush1.xpose.msra.mxu0 %v2339
    %2341 = vmatprep.subr.mxu0 0.0
    %v2342 = vand.u32 %v1999, 4294901760
    %v2343 = vsub.f32 %v1999, %v2342
    %v2344 = vand.u32 %v2343, 4294901760
    %2345 = vmatpush1.xpose.msra.mxu0 %v2344
    %2346 = vmatprep.subr.mxu0 0.0
    %v2347 = vand.u32 %v2002, 4294901760
    %v2348 = vsub.f32 %v2002, %v2347
    %v2349 = vand.u32 %v2348, 4294901760
    %2350 = vmatpush1.xpose.msra.mxu0 %v2349
    %2351 = vmatprep.subr.mxu0 0.0
    %2352 = vmatpush1.xpose.msra.mxu0 0.0
    %2353 = vmatprep.subr.mxu0 0.0
    %2354 = vmatpush1.xpose.msra.mxu0 0.0
    %2355 = vmatprep.subr.mxu0 0.0
    %2356 = vmatpush1.xpose.msra.mxu0 0.0
    %2357 = vmatprep.subr.mxu0 0.0
    %2358 = vmatpush1.xpose.msra.mxu0 0.0
    %2359 = vmatprep.subr.mxu0 0.0
    %2360 = vmatpush1.xpose.msra.mxu0 0.0
    %2361 = vmatprep.subr.mxu0 0.0
    %2362 = vmatpush1.xpose.msra.mxu0 0.0
    %2363 = vmatprep.subr.mxu0 0.0
    %2364 = vmatpush1.xpose.msra.mxu0 0.0
    %2365 = vmatprep.subr.mxu0 0.0
    %2366 = vmatpush1.xpose.msra.mxu0 0.0
    %2367 = vmatprep.subr.mxu0 0.0
    %2368 = vmatpush1.xpose.msra.mxu0 0.0
    %2369 = vmatprep.subr.mxu0 0.0
    %2370 = vmatpush1.xpose.msra.mxu0 0.0
    %2371 = vmatprep.subr.mxu0 0.0
    %2372 = vmatpush1.xpose.msra.mxu0 0.0
    %2373 = vmatprep.subr.mxu0 0.0
    %2374 = vmatpush1.xpose.msra.mxu0 0.0
    %2375 = vmatprep.subr.mxu0 0.0
    %2376 = vmatpush1.xpose.msra.mxu0 0.0
    %2377 = vmatprep.subr.mxu0 0.0
    %2378 = vmatpush1.xpose.msra.mxu0 0.0
    %2379 = vmatprep.subr.mxu0 0.0
    %2380 = vmatpush1.xpose.msra.mxu0 0.0
    %2381 = vmatprep.subr.mxu0 0.0
    %2382 = vmatpush1.xpose.msra.mxu0 0.0
    %2383 = vmatprep.subr.mxu0 0.0
    %2384 = vmatpush1.xpose.msra.mxu0 0.0
    %2385 = vmatprep.subr.mxu0 0.0
    %2386 = vmatpush1.xpose.msra.mxu0 0.0
    %2387 = vmatprep.subr.mxu0 0.0
    %2388 = vmatpush1.xpose.msra.mxu0 0.0
    %2389 = vmatprep.subr.mxu0 0.0
    %2390 = vmatpush1.xpose.msra.mxu0 0.0
    %2391 = vmatprep.subr.mxu0 0.0
    %2392 = vmatpush1.xpose.msra.mxu0 0.0
    %2393 = vmatprep.subr.mxu0 0.0
    %2394 = vmatpush1.xpose.msra.mxu0 0.0
    %2395 = vmatprep.subr.mxu0 0.0
    %2396 = vmatpush1.xpose.msra.mxu0 0.0
    %2397 = vmatprep.subr.mxu0 0.0
    %2398 = vmatpush1.xpose.msra.mxu0 0.0
    %2399 = vmatprep.subr.mxu0 0.0
    %2400 = vmatpush1.xpose.msra.mxu0 0.0
    %2401 = vmatprep.subr.mxu0 0.0
    %2402 = vmatpush1.xpose.msra.mxu0 0.0
    %2403 = vmatprep.subr.mxu0 0.0
    %2404 = vmatpush1.xpose.msra.mxu0 0.0
    %2405 = vmatprep.subr.mxu0 0.0
    %2406 = vmatpush1.xpose.msra.mxu0 0.0
    %2407 = vmatprep.mubr.f32.mxu0 0.0
    %v2408 = vand.u32 %v1990, 4294901760
    %2409 = vmatmul.mubr.f32.gmra.mrb[0].mxu0 %v2408
    %v2410 = vpop.f32.mrb[0].mxu0
    %v2411 = vadd.f32 %v2328, %v2410
    %v2412 = vpop.f32.mrb[0].mxu0
    %2413 = vdwg.mxu0
    %2414 = vmatprep.subr.mxu0 0.0
    %v2415 = vand.u32 %v1993, 4294901760
    %2416 = vmatpush1.xpose.msra.mxu0 %v2415
    %2417 = vmatprep.subr.mxu0 0.0
    %v2418 = vand.u32 %v1996, 4294901760
    %2419 = vmatpush1.xpose.msra.mxu0 %v2418
    %2420 = vmatprep.subr.mxu0 0.0
    %v2421 = vand.u32 %v1999, 4294901760
    %2422 = vmatpush1.xpose.msra.mxu0 %v2421
    %2423 = vmatprep.subr.mxu0 0.0
    %v2424 = vand.u32 %v2002, 4294901760
    %2425 = vmatpush1.xpose.msra.mxu0 %v2424
    %2426 = vmatprep.subr.mxu0 0.0
    %2427 = vmatpush1.xpose.msra.mxu0 0.0
    %2428 = vmatprep.subr.mxu0 0.0
    %2429 = vmatpush1.xpose.msra.mxu0 0.0
    %2430 = vmatprep.subr.mxu0 0.0
    %2431 = vmatpush1.xpose.msra.mxu0 0.0
    %2432 = vmatprep.subr.mxu0 0.0
    %2433 = vmatpush1.xpose.msra.mxu0 0.0
    %2434 = vmatprep.subr.mxu0 0.0
    %2435 = vmatpush1.xpose.msra.mxu0 0.0
    %2436 = vmatprep.subr.mxu0 0.0
    %2437 = vmatpush1.xpose.msra.mxu0 0.0
    %2438 = vmatprep.subr.mxu0 0.0
    %2439 = vmatpush1.xpose.msra.mxu0 0.0
    %2440 = vmatprep.subr.mxu0 0.0
    %2441 = vmatpush1.xpose.msra.mxu0 0.0
    %2442 = vmatprep.subr.mxu0 0.0
    %2443 = vmatpush1.xpose.msra.mxu0 0.0
    %2444 = vmatprep.subr.mxu0 0.0
    %2445 = vmatpush1.xpose.msra.mxu0 0.0
    %2446 = vmatprep.subr.mxu0 0.0
    %2447 = vmatpush1.xpose.msra.mxu0 0.0
    %2448 = vmatprep.subr.mxu0 0.0
    %2449 = vmatpush1.xpose.msra.mxu0 0.0
    %2450 = vmatprep.subr.mxu0 0.0
    %2451 = vmatpush1.xpose.msra.mxu0 0.0
    %2452 = vmatprep.subr.mxu0 0.0
    %2453 = vmatpush1.xpose.msra.mxu0 0.0
    %2454 = vmatprep.subr.mxu0 0.0
    %2455 = vmatpush1.xpose.msra.mxu0 0.0
    %2456 = vmatprep.subr.mxu0 0.0
    %2457 = vmatpush1.xpose.msra.mxu0 0.0
    %2458 = vmatprep.subr.mxu0 0.0
    %2459 = vmatpush1.xpose.msra.mxu0 0.0
    %2460 = vmatprep.subr.mxu0 0.0
    %2461 = vmatpush1.xpose.msra.mxu0 0.0
    %2462 = vmatprep.subr.mxu0 0.0
    %2463 = vmatpush1.xpose.msra.mxu0 0.0
    %2464 = vmatprep.subr.mxu0 0.0
    %2465 = vmatpush1.xpose.msra.mxu0 0.0
    %2466 = vmatprep.subr.mxu0 0.0
    %2467 = vmatpush1.xpose.msra.mxu0 0.0
    %2468 = vmatprep.subr.mxu0 0.0
    %2469 = vmatpush1.xpose.msra.mxu0 0.0
    %2470 = vmatprep.subr.mxu0 0.0
    %2471 = vmatpush1.xpose.msra.mxu0 0.0
    %2472 = vmatprep.subr.mxu0 0.0
    %2473 = vmatpush1.xpose.msra.mxu0 0.0
    %2474 = vmatprep.subr.mxu0 0.0
    %2475 = vmatpush1.xpose.msra.mxu0 0.0
    %2476 = vmatprep.subr.mxu0 0.0
    %2477 = vmatpush1.xpose.msra.mxu0 0.0
    %2478 = vmatprep.subr.mxu0 0.0
    %2479 = vmatpush1.xpose.msra.mxu0 0.0
    %2480 = vmatprep.subr.mxu0 0.0
    %2481 = vmatpush1.xpose.msra.mxu0 0.0
    %2482 = vmatprep.mubr.f32.mxu0 0.0
    %v2483 = vand.u32 %v1990, 4294901760
    %2484 = vmatmul.mubr.f32.gmra.mrb[0].mxu0 %v2483
    %v2485 = vpop.f32.mrb[0].mxu0
    %v2486 = vadd.f32 %v2411, %v2485
    %v2487 = vpop.f32.mrb[0].mxu0
    %2488 = vdwg.mxu0
    %2489 = vst.msk [vmem:[#allocation2] sm:$0xff] %vm550, %v2486
    // Predicated region
    $region14: #{member_gcn_forward.1} parent=1 // pred_check
      _
    $region15: #{member_gcn_forward.1} parent=1 // pred_check_branch
      %2491 = sbr.rel (0) target = $region17
    $region16: #{member_gcn_forward.1} parent=1 // pred_region
      %s2493 = ssub.s32 128, 128
      %2494 = vsyncadd [#allocation3], %s2493
      %s2496 = sshll.u32 [#allocation2], 4
      %s2497 = int_to_ptr.vmem [resolvable:$true] %s2496
      %2499 = dma.vmem_to_hbm [thread:$0]  %s2497, 128, %s3, [#allocation3]
    $region17: #{member_gcn_forward.1} parent=1 // pred_fallthru
      _
    // Predicated region
    $region18: #{member_gcn_forward.1} parent=1 // pred_check
      _
    $region19: #{member_gcn_forward.1} parent=1 // pred_check_branch
      %2501 = sbr.rel (0) target = $region21
    $region20: #{member_gcn_forward.1} parent=1 // pred_region
      %2502 = dma.done [#allocation3], 128
    $region21: #{member_gcn_forward.1} parent=1 // pred_fallthru
      _
    %2503 = vsyncpa [#allocation3], 1

</llo_original>
